<compile_context>
chip_gen: v6e
topology: v6e:2x2x1
jax: 0.10.0
libtpu: 0.0.40
codegen_flags: <defaults>
</compile_context>

<pallas_src>
import functools

import jax
import jax.numpy as jnp
from jax.experimental import pallas as pl
from jax.experimental.pallas import tpu as pltpu

LANE = 128  # TPU lane width: every feature dim is zero-padded to this.


# ----------------------------------------------------------------------------
# Fused MetaLayer kernel (edge MLP -> node MLP1 -> scatter-mean -> node MLP2
#                         -> graph scatter-mean -> global MLP)
# ----------------------------------------------------------------------------
def _meta_layer_kernel(idx_ref, x_ref, e_ref, u_ref, w_ref, b_ref,
                       x_out_ref, e_out_ref, u_out_ref):
    f32, bf16 = jnp.float32, jnp.bfloat16
    N = x_ref.shape[0]            # nodes
    E = e_ref.shape[0]            # edges
    B = u_ref.shape[0]            # graphs
    seg = idx_ref.shape[0] // 3   # 8-aligned stride of the packed index vectors

    def dot(a, b):                # MXU: bf16 x bf16 -> f32 accumulate
        return jnp.dot(a, b, preferred_element_type=f32)

    def dot_t(a, b):              # a^T @ b via leading-axis contraction
        return jax.lax.dot_general(a, b, (((0,), (0,)), ((), ())),
                                   preferred_element_type=f32)

    def relu_bf(h):               # ReLU in f32, cast to bf16 for the next dot
        return jnp.maximum(h, 0.0).astype(bf16)

    row_c = idx_ref[0:E, :]                       # (E,1) source node per edge
    col_c = idx_ref[seg:seg + E, :]               # (E,1) destination node per edge
    batch_c = idx_ref[2 * seg:2 * seg + N, :]     # (N,1) graph id per node

    x = x_ref[...]        # (N,128) bf16, lane-padded node features
    e = e_ref[...]        # (E,128) bf16, lane-padded edge features
    u = u_ref[...]        # (B,128) bf16, lane-padded global features
    biases = b_ref[...]   # (8,128) f32

    # One-hot gather operators built in VMEM in bf16 (0/1 values are exact).
    g_row = jnp.where(jax.lax.broadcasted_iota(jnp.int32, (E, N), 1) == row_c,
                      1.0, 0.0).astype(bf16)                         # (E,N)
    g_col = jnp.where(jax.lax.broadcasted_iota(jnp.int32, (E, N), 1) == col_c,
                      1.0, 0.0).astype(bf16)                         # (E,N)
    g_b = jnp.where(jax.lax.broadcasted_iota(jnp.int32, (N, B), 1) == batch_c,
                    1.0, 0.0).astype(bf16)                           # (N,B)

    # Gathers on the MXU (a one-hot row selects a single bf16 value -> exact).
    x_row = dot(g_row, x).astype(bf16)            # x[row]          (E,128)
    x_col = dot(g_col, x).astype(bf16)            # x[col]          (E,128)
    u_nodes = dot(g_b, u).astype(bf16)            # u[batch]        (N,128)
    u_erow = dot(g_row, u_nodes).astype(bf16)     # u[batch[row]]   (E,128)

    # ---- edge model: relu(concat @ W1 + b1) @ W2 + b2, concat-free ----------
    he = relu_bf(dot(x_row, w_ref[0]) + dot(x_col, w_ref[1]) + dot(e, w_ref[2])
                 + dot(u_erow, w_ref[3]) + biases[0:1])
    e_new = dot(he, w_ref[4]) + biases[1:2]                          # (E,128) f32
    e_out_ref[...] = e_new.astype(e_out_ref.dtype)
    e_new = e_new.astype(bf16)

    # ---- node model: MLP1 per edge, scatter-mean onto dst nodes, MLP2 -------
    h1 = relu_bf(dot(x_row, w_ref[5]) + dot(e_new, w_ref[6]) + biases[2:3])
    h1 = (dot(h1, w_ref[7]) + biases[3:4]).astype(bf16)              # (E,128)
    sums = dot_t(g_col, h1)                                          # (N,128) f32
    cnt = dot_t(g_col, jnp.ones((E, 1), bf16))                       # (N,1) exact
    agg = (sums * pl.reciprocal(jnp.maximum(cnt, 1.0), approx=False)).astype(bf16)
    h2 = relu_bf(dot(x, w_ref[8]) + dot(agg, w_ref[9])
                 + dot(u_nodes, w_ref[10]) + biases[4:5])
    x_new = dot(h2, w_ref[11]) + biases[5:6]                         # (N,128) f32
    x_out_ref[...] = x_new.astype(x_out_ref.dtype)
    x_new = x_new.astype(bf16)

    # ---- global model: per-graph mean of new node features, then MLP --------
    sums_g = dot_t(g_b, x_new)                                       # (B,128) f32
    cnt_g = dot_t(g_b, jnp.ones((N, 1), bf16))                       # (B,1)
    x_mean = (sums_g * pl.reciprocal(jnp.maximum(cnt_g, 1.0),
                                     approx=False)).astype(bf16)
    hg = relu_bf(dot(u, w_ref[12]) + dot(x_mean, w_ref[13]) + biases[6:7])
    u_out_ref[...] = (dot(hg, w_ref[14]) + biases[7:8]).astype(u_out_ref.dtype)


# ----------------------------------------------------------------------------
# One-time parameter preparation (call once, OUTSIDE jit)
# ----------------------------------------------------------------------------
def prepare_params(params):
    """Split each W1 row-wise (concat-free dots), zero-pad every block to a
    lane-dense (128,128) tile, cast MXU operands to bf16, and pack everything
    into ONE weight slab + ONE f32 bias slab (2 parameter DMAs per forward)."""
    ew1, eb1, ew2, eb2 = params["edge"]
    n1w1, n1b1, n1w2, n1b2 = params["node1"]
    n2w1, n2b1, n2w2, n2b2 = params["node2"]
    gw1, gb1, gw2, gb2 = params["global"]

    FE, HID, FX, FU = ew2.shape[1], ew1.shape[1], n2w2.shape[1], gw2.shape[1]
    # TODO(synk): tile feature/hidden dims over a grid if any exceeds 128.
    assert max(FX, FE, FU, HID) <= LANE

    ew1a, ew1b, ew1c, ew1d = jnp.split(ew1, [FX, 2 * FX, 2 * FX + FE], axis=0)
    n1w1a, n1w1b = jnp.split(n1w1, [FX], axis=0)
    n2w1a, n2w1b, n2w1c = jnp.split(n2w1, [FX, FX + HID], axis=0)
    gw1a, gw1b = jnp.split(gw1, [FU], axis=0)

    def pad_w(w):
        r, c = w.shape
        return jnp.pad(w, ((0, LANE - r), (0, LANE - c))).astype(jnp.bfloat16)

    def pad_b(b):
        return jnp.pad(b, ((0, 0), (0, LANE - b.shape[1]))).astype(jnp.float32)

    w_slab = jnp.stack([pad_w(w) for w in (
        ew1a, ew1b, ew1c, ew1d, ew2,          # 0-4   edge model
        n1w1a, n1w1b, n1w2,                   # 5-7   node model, stage 1
        n2w1a, n2w1b, n2w1c, n2w2,            # 8-11  node model, stage 2
        gw1a, gw1b, gw2)])                    # 12-14 global model
    b_slab = jnp.concatenate([pad_b(b) for b in (
        eb1, eb2, n1b1, n1b2, n2b1, n2b2, gb1, gb2)], axis=0)
    return {"w": w_slab, "b": b_slab}


def _pad_rows(v, n):
    return jnp.pad(v, (0, n - v.shape[0]))


# ----------------------------------------------------------------------------
# MetaLayer forward: single fused pallas_call
# ----------------------------------------------------------------------------
def meta_layer_forward(prepared, x, edge_index, edge_attr, u, batch):
    N, FX = x.shape
    E, FE = edge_attr.shape
    B, FU = u.shape

    # Pack row/col/batch into ONE int32 operand; each vector sits at an
    # 8-aligned sublane offset so the kernel reads it back with static,
    # tile-aligned slices.  (No runtime check for out-of-range indices.)
    seg = ((max(E, N) + 7) // 8) * 8
    idx = jnp.concatenate([
        _pad_rows(edge_index[0].astype(jnp.int32), seg),
        _pad_rows(edge_index[1].astype(jnp.int32), seg),
        _pad_rows(batch.astype(jnp.int32), seg)]).reshape(3 * seg, 1)

    def pad_lane(a):  # lane-dense bf16 activations (zero padding is exact)
        return jnp.pad(a, ((0, 0), (0, LANE - a.shape[1]))).astype(jnp.bfloat16)

    vmem = functools.partial(pl.BlockSpec, memory_space=pltpu.MemorySpace.VMEM)
    x_o, e_o, u_o = pl.pallas_call(
        _meta_layer_kernel,
        out_shape=(
            jax.ShapeDtypeStruct((N, LANE), jnp.float32),
            jax.ShapeDtypeStruct((E, LANE), jnp.float32),
            jax.ShapeDtypeStruct((B, LANE), jnp.float32),
        ),
        in_specs=[vmem() for _ in range(6)],
        out_specs=(vmem(), vmem(), vmem()),
    )(idx, pad_lane(x), pad_lane(edge_attr), pad_lane(u),
      prepared["w"], prepared["b"])

    # Lane-dense (., 128) outputs sliced back to the module's feature dims.
    return x_o[:, :FX], e_o[:, :FE], u_o[:, :FU]


# ----------------------------------------------------------------------------
# Pure-JAX reference (module semantics, for correctness check)
# ----------------------------------------------------------------------------
def meta_layer_ref(params, x, edge_index, edge_attr, u, batch, *, bf16_dots):
    """bf16_dots=True mirrors the kernel's MXU numerics (bf16 operands, f32
    accumulation); bf16_dots=False is the exact-f32 module math."""
    def dot(a, b):
        if bf16_dots:
            a, b, prec = a.astype(jnp.bfloat16), b.astype(jnp.bfloat16), None
        else:
            prec = jax.lax.Precision.HIGHEST
        return jax.lax.dot_general(a, b, (((1,), (0,)), ((), ())),
                                   precision=prec,
                                   preferred_element_type=jnp.float32)

    def mlp(h, w1, b1, w2, b2):
        return dot(jnp.maximum(dot(h, w1) + b1, 0.0), w2) + b2

    def scatter_mean(vals, seg_ids, num):
        onehot = (seg_ids[None, :] == jnp.arange(num)[:, None]).astype(jnp.float32)
        cnt = jnp.sum(onehot, axis=1, keepdims=True)
        return dot(onehot, vals) / jnp.maximum(cnt, 1.0)

    row, col = edge_index[0], edge_index[1]
    e_in = jnp.concatenate([x[row], x[col], edge_attr, u[batch[row]]], axis=1)
    edge_attr = mlp(e_in, *params["edge"])
    h = mlp(jnp.concatenate([x[row], edge_attr], axis=1), *params["node1"])
    agg = scatter_mean(h, col, x.shape[0])
    x = mlp(jnp.concatenate([x, agg, u[batch]], axis=1), *params["node2"])
    x_mean = scatter_mean(x, batch, u.shape[0])
    u = mlp(jnp.concatenate([u, x_mean], axis=1), *params["global"])
    return x, edge_attr, u


# ----------------------------------------------------------------------------
# Deterministic parameter init
# ----------------------------------------------------------------------------
def _init_mlp(key, d_in, d_hidden, d_out):
    k1, k2 = jax.random.split(key)
    w1 = jax.random.normal(k1, (d_in, d_hidden), jnp.float32) * (1.0 / jnp.sqrt(d_in))
    b1 = jnp.zeros((1, d_hidden), jnp.float32)
    w2 = jax.random.normal(k2, (d_hidden, d_out), jnp.float32) * (1.0 / jnp.sqrt(d_hidden))
    b2 = jnp.zeros((1, d_out), jnp.float32)
    return (w1, b1, w2, b2)


if __name__ == "__main__":
    # small synthetic graph
    N, E, B = 12, 24, 2          # nodes, edges, graphs
    FX, FE, FU, HID = 8, 4, 6, 32

    key = jax.random.PRNGKey(0)
    k_x, k_e, k_u, k_ei, kp1, kp2, kp3, kp4 = jax.random.split(key, 8)

    x = jax.random.normal(k_x, (N, FX), jnp.float32)
    edge_attr = jax.random.normal(k_e, (E, FE), jnp.float32)
    u = jax.random.normal(k_u, (B, FU), jnp.float32)
    edge_index = jax.random.randint(k_ei, (2, E), 0, N, dtype=jnp.int32)
    batch = (jnp.arange(N) >= (N // 2)).astype(jnp.int32)  # first half = graph 0

    params = {
        "edge":   _init_mlp(kp1, 2 * FX + FE + FU, HID, FE),
        "node1":  _init_mlp(kp2, FX + FE, HID, HID),
        "node2":  _init_mlp(kp3, FX + HID + FU, HID, FX),
        "global": _init_mlp(kp4, FU + FX, HID, FU),
    }

    prepared = prepare_params(params)            # one-time split / pad / pack
    fwd = jax.jit(functools.partial(meta_layer_forward, prepared))
    x_out, e_out, u_out = fwd(x, edge_index, edge_attr, u, batch)
    jax.block_until_ready((x_out, e_out, u_out))

    # Tight check against a reference with the kernel's exact MXU numerics
    # (bf16 operands, f32 accumulation, exact segment-mean divide).
    x_rb, e_rb, u_rb = meta_layer_ref(params, x, edge_index, edge_attr, u,
                                      batch, bf16_dots=True)
    assert jnp.allclose(e_out, e_rb, rtol=5e-3, atol=5e-3)
    assert jnp.allclose(x_out, x_rb, rtol=5e-3, atol=5e-3)
    assert jnp.allclose(u_out, u_rb, rtol=5e-3, atol=5e-3)

    # Loose check against the pure-f32 module reference: the only deviation is
    # bf16 rounding of MXU operands (as anticipated by the perf review).
    x_rf, e_rf, u_rf = meta_layer_ref(params, x, edge_index, edge_attr, u,
                                      batch, bf16_dots=False)
    assert jnp.allclose(e_out, e_rf, rtol=1e-1, atol=1e-1)
    assert jnp.allclose(x_out, x_rf, rtol=1e-1, atol=1e-1)
    assert jnp.allclose(u_out, u_rf, rtol=1e-1, atol=1e-1)

    print("KERNEL_OK")
</pallas_src>

<mosaic_0001>
module attributes {stable_mosaic.version = 11 : i64} {
  func.func @_meta_layer_kernel(%arg0: memref<72x1xi32, #tpu.memory_space<vmem>>, %arg1: memref<12x128xbf16, #tpu.memory_space<vmem>>, %arg2: memref<24x128xbf16, #tpu.memory_space<vmem>>, %arg3: memref<2x128xbf16, #tpu.memory_space<vmem>>, %arg4: memref<15x128x128xbf16, #tpu.memory_space<vmem>>, %arg5: memref<8x128xf32, #tpu.memory_space<vmem>>, %arg6: memref<12x128xf32, #tpu.memory_space<vmem>>, %arg7: memref<24x128xf32, #tpu.memory_space<vmem>>, %arg8: memref<2x128xf32, #tpu.memory_space<vmem>>) attributes {dimension_semantics = [], scalar_prefetch = 0 : i64, scratch_operands = 0 : i64, tpu.core_type = #tpu.core_type<tc>} {
    %c0 = arith.constant 0 : index
    %c0_0 = arith.constant 0 : index
    %0 = vector.load %arg0[%c0, %c0_0] : memref<72x1xi32, #tpu.memory_space<vmem>>, vector<24x1xi32>
    %c24 = arith.constant 24 : index
    %c0_1 = arith.constant 0 : index
    %1 = vector.load %arg0[%c24, %c0_1] : memref<72x1xi32, #tpu.memory_space<vmem>>, vector<24x1xi32>
    %c48 = arith.constant 48 : index
    %c0_2 = arith.constant 0 : index
    %2 = vector.load %arg0[%c48, %c0_2] : memref<72x1xi32, #tpu.memory_space<vmem>>, vector<12x1xi32>
    %c0_3 = arith.constant 0 : index
    %c0_4 = arith.constant 0 : index
    %3 = vector.load %arg1[%c0_3, %c0_4] : memref<12x128xbf16, #tpu.memory_space<vmem>>, vector<12x128xbf16>
    %c0_5 = arith.constant 0 : index
    %c0_6 = arith.constant 0 : index
    %4 = vector.load %arg2[%c0_5, %c0_6] : memref<24x128xbf16, #tpu.memory_space<vmem>>, vector<24x128xbf16>
    %c0_7 = arith.constant 0 : index
    %c0_8 = arith.constant 0 : index
    %5 = vector.load %arg3[%c0_7, %c0_8] : memref<2x128xbf16, #tpu.memory_space<vmem>>, vector<2x128xbf16>
    %c0_9 = arith.constant 0 : index
    %c0_10 = arith.constant 0 : index
    %6 = vector.load %arg5[%c0_9, %c0_10] : memref<8x128xf32, #tpu.memory_space<vmem>>, vector<8x128xf32>
    %7 = tpu.iota {dimensions = array<i32: 1>} : vector<24x12xi32>
    %8 = vector.broadcast %0 : vector<24x1xi32> to vector<24x12xi32>
    %9 = arith.cmpi eq, %7, %8 : vector<24x12xi32>
    %cst = arith.constant 1.000000e+00 : f32
    %cst_11 = arith.constant 0.000000e+00 : f32
    %10 = vector.broadcast %cst : f32 to vector<24x12xf32>
    %11 = vector.broadcast %cst_11 : f32 to vector<24x12xf32>
    %12 = arith.select %9, %10, %11 : vector<24x12xi1>, vector<24x12xf32>
    %13 = arith.truncf %12 : vector<24x12xf32> to vector<24x12xbf16>
    %14 = tpu.iota {dimensions = array<i32: 1>} : vector<24x12xi32>
    %15 = vector.broadcast %1 : vector<24x1xi32> to vector<24x12xi32>
    %16 = arith.cmpi eq, %14, %15 : vector<24x12xi32>
    %cst_12 = arith.constant 1.000000e+00 : f32
    %cst_13 = arith.constant 0.000000e+00 : f32
    %17 = vector.broadcast %cst_12 : f32 to vector<24x12xf32>
    %18 = vector.broadcast %cst_13 : f32 to vector<24x12xf32>
    %19 = arith.select %16, %17, %18 : vector<24x12xi1>, vector<24x12xf32>
    %20 = arith.truncf %19 : vector<24x12xf32> to vector<24x12xbf16>
    %21 = tpu.iota {dimensions = array<i32: 1>} : vector<12x2xi32>
    %22 = vector.broadcast %2 : vector<12x1xi32> to vector<12x2xi32>
    %23 = arith.cmpi eq, %21, %22 : vector<12x2xi32>
    %cst_14 = arith.constant 1.000000e+00 : f32
    %cst_15 = arith.constant 0.000000e+00 : f32
    %24 = vector.broadcast %cst_14 : f32 to vector<12x2xf32>
    %25 = vector.broadcast %cst_15 : f32 to vector<12x2xf32>
    %26 = arith.select %23, %24, %25 : vector<12x2xi1>, vector<12x2xf32>
    %27 = arith.truncf %26 : vector<12x2xf32> to vector<12x2xbf16>
    %cst_16 = arith.constant dense<0.000000e+00> : vector<24x128xf32>
    %28 = tpu.matmul %13, %3, %cst_16 {dimension_numbers = #tpu.dot_dimension_numbers<[1], [0], [0], [1], [0, 0, 1, 1], [], []>} : vector<24x12xbf16>, vector<12x128xbf16>, vector<24x128xf32> -> vector<24x128xf32>
    %29 = arith.truncf %28 : vector<24x128xf32> to vector<24x128xbf16>
    %cst_17 = arith.constant dense<0.000000e+00> : vector<24x128xf32>
    %30 = tpu.matmul %20, %3, %cst_17 {dimension_numbers = #tpu.dot_dimension_numbers<[1], [0], [0], [1], [0, 0, 1, 1], [], []>} : vector<24x12xbf16>, vector<12x128xbf16>, vector<24x128xf32> -> vector<24x128xf32>
    %31 = arith.truncf %30 : vector<24x128xf32> to vector<24x128xbf16>
    %cst_18 = arith.constant dense<0.000000e+00> : vector<12x128xf32>
    %32 = tpu.matmul %27, %5, %cst_18 {dimension_numbers = #tpu.dot_dimension_numbers<[1], [0], [0], [1], [0, 0, 1, 1], [], []>} : vector<12x2xbf16>, vector<2x128xbf16>, vector<12x128xf32> -> vector<12x128xf32>
    %33 = arith.truncf %32 : vector<12x128xf32> to vector<12x128xbf16>
    %cst_19 = arith.constant dense<0.000000e+00> : vector<24x128xf32>
    %34 = tpu.matmul %13, %33, %cst_19 {dimension_numbers = #tpu.dot_dimension_numbers<[1], [0], [0], [1], [0, 0, 1, 1], [], []>} : vector<24x12xbf16>, vector<12x128xbf16>, vector<24x128xf32> -> vector<24x128xf32>
    %35 = arith.truncf %34 : vector<24x128xf32> to vector<24x128xbf16>
    %c0_20 = arith.constant 0 : index
    %c0_21 = arith.constant 0 : index
    %c0_22 = arith.constant 0 : index
    %36 = vector.load %arg4[%c0_20, %c0_21, %c0_22] : memref<15x128x128xbf16, #tpu.memory_space<vmem>>, vector<1x128x128xbf16>
    %37 = vector.shape_cast %36 : vector<1x128x128xbf16> to vector<128x128xbf16>
    %cst_23 = arith.constant dense<0.000000e+00> : vector<24x128xf32>
    %38 = tpu.matmul %29, %37, %cst_23 {dimension_numbers = #tpu.dot_dimension_numbers<[1], [0], [0], [1], [0, 0, 1, 1], [], []>} : vector<24x128xbf16>, vector<128x128xbf16>, vector<24x128xf32> -> vector<24x128xf32>
    %c1 = arith.constant 1 : index
    %c0_24 = arith.constant 0 : index
    %c0_25 = arith.constant 0 : index
    %39 = vector.load %arg4[%c1, %c0_24, %c0_25] : memref<15x128x128xbf16, #tpu.memory_space<vmem>>, vector<1x128x128xbf16>
    %40 = vector.shape_cast %39 : vector<1x128x128xbf16> to vector<128x128xbf16>
    %cst_26 = arith.constant dense<0.000000e+00> : vector<24x128xf32>
    %41 = tpu.matmul %31, %40, %cst_26 {dimension_numbers = #tpu.dot_dimension_numbers<[1], [0], [0], [1], [0, 0, 1, 1], [], []>} : vector<24x128xbf16>, vector<128x128xbf16>, vector<24x128xf32> -> vector<24x128xf32>
    %42 = arith.addf %38, %41 : vector<24x128xf32>
    %c2 = arith.constant 2 : index
    %c0_27 = arith.constant 0 : index
    %c0_28 = arith.constant 0 : index
    %43 = vector.load %arg4[%c2, %c0_27, %c0_28] : memref<15x128x128xbf16, #tpu.memory_space<vmem>>, vector<1x128x128xbf16>
    %44 = vector.shape_cast %43 : vector<1x128x128xbf16> to vector<128x128xbf16>
    %cst_29 = arith.constant dense<0.000000e+00> : vector<24x128xf32>
    %45 = tpu.matmul %4, %44, %cst_29 {dimension_numbers = #tpu.dot_dimension_numbers<[1], [0], [0], [1], [0, 0, 1, 1], [], []>} : vector<24x128xbf16>, vector<128x128xbf16>, vector<24x128xf32> -> vector<24x128xf32>
    %46 = arith.addf %42, %45 : vector<24x128xf32>
    %c3 = arith.constant 3 : index
    %c0_30 = arith.constant 0 : index
    %c0_31 = arith.constant 0 : index
    %47 = vector.load %arg4[%c3, %c0_30, %c0_31] : memref<15x128x128xbf16, #tpu.memory_space<vmem>>, vector<1x128x128xbf16>
    %48 = vector.shape_cast %47 : vector<1x128x128xbf16> to vector<128x128xbf16>
    %cst_32 = arith.constant dense<0.000000e+00> : vector<24x128xf32>
    %49 = tpu.matmul %35, %48, %cst_32 {dimension_numbers = #tpu.dot_dimension_numbers<[1], [0], [0], [1], [0, 0, 1, 1], [], []>} : vector<24x128xbf16>, vector<128x128xbf16>, vector<24x128xf32> -> vector<24x128xf32>
    %50 = arith.addf %46, %49 : vector<24x128xf32>
    %51 = vector.extract_strided_slice %6 {offsets = [0, 0], sizes = [1, 128], strides = [1, 1]} : vector<8x128xf32> to vector<1x128xf32>
    %52 = vector.broadcast %51 : vector<1x128xf32> to vector<24x128xf32>
    %53 = arith.addf %50, %52 : vector<24x128xf32>
    %cst_33 = arith.constant 0.000000e+00 : f32
    %54 = vector.broadcast %cst_33 : f32 to vector<24x128xf32>
    %55 = arith.maximumf %53, %54 : vector<24x128xf32>
    %56 = arith.truncf %55 : vector<24x128xf32> to vector<24x128xbf16>
    %c4 = arith.constant 4 : index
    %c0_34 = arith.constant 0 : index
    %c0_35 = arith.constant 0 : index
    %57 = vector.load %arg4[%c4, %c0_34, %c0_35] : memref<15x128x128xbf16, #tpu.memory_space<vmem>>, vector<1x128x128xbf16>
    %58 = vector.shape_cast %57 : vector<1x128x128xbf16> to vector<128x128xbf16>
    %cst_36 = arith.constant dense<0.000000e+00> : vector<24x128xf32>
    %59 = tpu.matmul %56, %58, %cst_36 {dimension_numbers = #tpu.dot_dimension_numbers<[1], [0], [0], [1], [0, 0, 1, 1], [], []>} : vector<24x128xbf16>, vector<128x128xbf16>, vector<24x128xf32> -> vector<24x128xf32>
    %60 = vector.extract_strided_slice %6 {offsets = [1, 0], sizes = [1, 128], strides = [1, 1]} : vector<8x128xf32> to vector<1x128xf32>
    %61 = vector.broadcast %60 : vector<1x128xf32> to vector<24x128xf32>
    %62 = arith.addf %59, %61 : vector<24x128xf32>
    %c0_37 = arith.constant 0 : index
    %c0_38 = arith.constant 0 : index
    %63 = vector.load %arg7[%c0_37, %c0_38] : memref<24x128xf32, #tpu.memory_space<vmem>>, vector<24x128xf32>
    tpu.vector_store %arg7[%c0_37, %c0_38], %62 {strides = array<i32>} : memref<24x128xf32, #tpu.memory_space<vmem>>, vector<24x128xf32>,
    %64 = arith.truncf %62 : vector<24x128xf32> to vector<24x128xbf16>
    %c5 = arith.constant 5 : index
    %c0_39 = arith.constant 0 : index
    %c0_40 = arith.constant 0 : index
    %65 = vector.load %arg4[%c5, %c0_39, %c0_40] : memref<15x128x128xbf16, #tpu.memory_space<vmem>>, vector<1x128x128xbf16>
    %66 = vector.shape_cast %65 : vector<1x128x128xbf16> to vector<128x128xbf16>
    %cst_41 = arith.constant dense<0.000000e+00> : vector<24x128xf32>
    %67 = tpu.matmul %29, %66, %cst_41 {dimension_numbers = #tpu.dot_dimension_numbers<[1], [0], [0], [1], [0, 0, 1, 1], [], []>} : vector<24x128xbf16>, vector<128x128xbf16>, vector<24x128xf32> -> vector<24x128xf32>
    %c6 = arith.constant 6 : index
    %c0_42 = arith.constant 0 : index
    %c0_43 = arith.constant 0 : index
    %68 = vector.load %arg4[%c6, %c0_42, %c0_43] : memref<15x128x128xbf16, #tpu.memory_space<vmem>>, vector<1x128x128xbf16>
    %69 = vector.shape_cast %68 : vector<1x128x128xbf16> to vector<128x128xbf16>
    %cst_44 = arith.constant dense<0.000000e+00> : vector<24x128xf32>
    %70 = tpu.matmul %64, %69, %cst_44 {dimension_numbers = #tpu.dot_dimension_numbers<[1], [0], [0], [1], [0, 0, 1, 1], [], []>} : vector<24x128xbf16>, vector<128x128xbf16>, vector<24x128xf32> -> vector<24x128xf32>
    %71 = arith.addf %67, %70 : vector<24x128xf32>
    %72 = vector.extract_strided_slice %6 {offsets = [2, 0], sizes = [1, 128], strides = [1, 1]} : vector<8x128xf32> to vector<1x128xf32>
    %73 = vector.broadcast %72 : vector<1x128xf32> to vector<24x128xf32>
    %74 = arith.addf %71, %73 : vector<24x128xf32>
    %cst_45 = arith.constant 0.000000e+00 : f32
    %75 = vector.broadcast %cst_45 : f32 to vector<24x128xf32>
    %76 = arith.maximumf %74, %75 : vector<24x128xf32>
    %77 = arith.truncf %76 : vector<24x128xf32> to vector<24x128xbf16>
    %c7 = arith.constant 7 : index
    %c0_46 = arith.constant 0 : index
    %c0_47 = arith.constant 0 : index
    %78 = vector.load %arg4[%c7, %c0_46, %c0_47] : memref<15x128x128xbf16, #tpu.memory_space<vmem>>, vector<1x128x128xbf16>
    %79 = vector.shape_cast %78 : vector<1x128x128xbf16> to vector<128x128xbf16>
    %cst_48 = arith.constant dense<0.000000e+00> : vector<24x128xf32>
    %80 = tpu.matmul %77, %79, %cst_48 {dimension_numbers = #tpu.dot_dimension_numbers<[1], [0], [0], [1], [0, 0, 1, 1], [], []>} : vector<24x128xbf16>, vector<128x128xbf16>, vector<24x128xf32> -> vector<24x128xf32>
    %81 = vector.extract_strided_slice %6 {offsets = [3, 0], sizes = [1, 128], strides = [1, 1]} : vector<8x128xf32> to vector<1x128xf32>
    %82 = vector.broadcast %81 : vector<1x128xf32> to vector<24x128xf32>
    %83 = arith.addf %80, %82 : vector<24x128xf32>
    %84 = arith.truncf %83 : vector<24x128xf32> to vector<24x128xbf16>
    %cst_49 = arith.constant dense<0.000000e+00> : vector<12x128xf32>
    %85 = tpu.matmul %20, %84, %cst_49 {dimension_numbers = #tpu.dot_dimension_numbers<[0], [0], [1], [1], [0, 1, 1, 1], [], []>} : vector<24x12xbf16>, vector<24x128xbf16>, vector<12x128xf32> -> vector<12x128xf32>
    %cst_50 = arith.constant 1.000000e+00 : bf16
    %86 = vector.broadcast %cst_50 : bf16 to vector<24x1xbf16>
    %cst_51 = arith.constant dense<0.000000e+00> : vector<12x1xf32>
    %87 = tpu.matmul %20, %86, %cst_51 {dimension_numbers = #tpu.dot_dimension_numbers<[0], [0], [1], [1], [0, 1, 1, 1], [], []>} : vector<24x12xbf16>, vector<24x1xbf16>, vector<12x1xf32> -> vector<12x1xf32>
    %cst_52 = arith.constant 1.000000e+00 : f32
    %88 = vector.broadcast %cst_52 : f32 to vector<12x1xf32>
    %89 = arith.maximumf %87, %88 : vector<12x1xf32>
    %90 = tpu.reciprocal %89 : vector<12x1xf32> -> vector<12x1xf32>
    %91 = vector.broadcast %90 : vector<12x1xf32> to vector<12x128xf32>
    %92 = arith.mulf %85, %91 : vector<12x128xf32>
    %93 = arith.truncf %92 : vector<12x128xf32> to vector<12x128xbf16>
    %c8 = arith.constant 8 : index
    %c0_53 = arith.constant 0 : index
    %c0_54 = arith.constant 0 : index
    %94 = vector.load %arg4[%c8, %c0_53, %c0_54] : memref<15x128x128xbf16, #tpu.memory_space<vmem>>, vector<1x128x128xbf16>
    %95 = vector.shape_cast %94 : vector<1x128x128xbf16> to vector<128x128xbf16>
    %cst_55 = arith.constant dense<0.000000e+00> : vector<12x128xf32>
    %96 = tpu.matmul %3, %95, %cst_55 {dimension_numbers = #tpu.dot_dimension_numbers<[1], [0], [0], [1], [0, 0, 1, 1], [], []>} : vector<12x128xbf16>, vector<128x128xbf16>, vector<12x128xf32> -> vector<12x128xf32>
    %c9 = arith.constant 9 : index
    %c0_56 = arith.constant 0 : index
    %c0_57 = arith.constant 0 : index
    %97 = vector.load %arg4[%c9, %c0_56, %c0_57] : memref<15x128x128xbf16, #tpu.memory_space<vmem>>, vector<1x128x128xbf16>
    %98 = vector.shape_cast %97 : vector<1x128x128xbf16> to vector<128x128xbf16>
    %cst_58 = arith.constant dense<0.000000e+00> : vector<12x128xf32>
    %99 = tpu.matmul %93, %98, %cst_58 {dimension_numbers = #tpu.dot_dimension_numbers<[1], [0], [0], [1], [0, 0, 1, 1], [], []>} : vector<12x128xbf16>, vector<128x128xbf16>, vector<12x128xf32> -> vector<12x128xf32>
    %100 = arith.addf %96, %99 : vector<12x128xf32>
    %c10 = arith.constant 10 : index
    %c0_59 = arith.constant 0 : index
    %c0_60 = arith.constant 0 : index
    %101 = vector.load %arg4[%c10, %c0_59, %c0_60] : memref<15x128x128xbf16, #tpu.memory_space<vmem>>, vector<1x128x128xbf16>
    %102 = vector.shape_cast %101 : vector<1x128x128xbf16> to vector<128x128xbf16>
    %cst_61 = arith.constant dense<0.000000e+00> : vector<12x128xf32>
    %103 = tpu.matmul %33, %102, %cst_61 {dimension_numbers = #tpu.dot_dimension_numbers<[1], [0], [0], [1], [0, 0, 1, 1], [], []>} : vector<12x128xbf16>, vector<128x128xbf16>, vector<12x128xf32> -> vector<12x128xf32>
    %104 = arith.addf %100, %103 : vector<12x128xf32>
    %105 = vector.extract_strided_slice %6 {offsets = [4, 0], sizes = [1, 128], strides = [1, 1]} : vector<8x128xf32> to vector<1x128xf32>
    %106 = vector.broadcast %105 : vector<1x128xf32> to vector<12x128xf32>
    %107 = arith.addf %104, %106 : vector<12x128xf32>
    %cst_62 = arith.constant 0.000000e+00 : f32
    %108 = vector.broadcast %cst_62 : f32 to vector<12x128xf32>
    %109 = arith.maximumf %107, %108 : vector<12x128xf32>
    %110 = arith.truncf %109 : vector<12x128xf32> to vector<12x128xbf16>
    %c11 = arith.constant 11 : index
    %c0_63 = arith.constant 0 : index
    %c0_64 = arith.constant 0 : index
    %111 = vector.load %arg4[%c11, %c0_63, %c0_64] : memref<15x128x128xbf16, #tpu.memory_space<vmem>>, vector<1x128x128xbf16>
    %112 = vector.shape_cast %111 : vector<1x128x128xbf16> to vector<128x128xbf16>
    %cst_65 = arith.constant dense<0.000000e+00> : vector<12x128xf32>
    %113 = tpu.matmul %110, %112, %cst_65 {dimension_numbers = #tpu.dot_dimension_numbers<[1], [0], [0], [1], [0, 0, 1, 1], [], []>} : vector<12x128xbf16>, vector<128x128xbf16>, vector<12x128xf32> -> vector<12x128xf32>
    %114 = vector.extract_strided_slice %6 {offsets = [5, 0], sizes = [1, 128], strides = [1, 1]} : vector<8x128xf32> to vector<1x128xf32>
    %115 = vector.broadcast %114 : vector<1x128xf32> to vector<12x128xf32>
    %116 = arith.addf %113, %115 : vector<12x128xf32>
    %c0_66 = arith.constant 0 : index
    %c0_67 = arith.constant 0 : index
    %117 = vector.load %arg6[%c0_66, %c0_67] : memref<12x128xf32, #tpu.memory_space<vmem>>, vector<12x128xf32>
    tpu.vector_store %arg6[%c0_66, %c0_67], %116 {strides = array<i32>} : memref<12x128xf32, #tpu.memory_space<vmem>>, vector<12x128xf32>,
    %118 = arith.truncf %116 : vector<12x128xf32> to vector<12x128xbf16>
    %cst_68 = arith.constant dense<0.000000e+00> : vector<2x128xf32>
    %119 = tpu.matmul %27, %118, %cst_68 {dimension_numbers = #tpu.dot_dimension_numbers<[0], [0], [1], [1], [0, 1, 1, 1], [], []>} : vector<12x2xbf16>, vector<12x128xbf16>, vector<2x128xf32> -> vector<2x128xf32>
    %cst_69 = arith.constant 1.000000e+00 : bf16
    %120 = vector.broadcast %cst_69 : bf16 to vector<12x1xbf16>
    %cst_70 = arith.constant dense<0.000000e+00> : vector<2x1xf32>
    %121 = tpu.matmul %27, %120, %cst_70 {dimension_numbers = #tpu.dot_dimension_numbers<[0], [0], [1], [1], [0, 1, 1, 1], [], []>} : vector<12x2xbf16>, vector<12x1xbf16>, vector<2x1xf32> -> vector<2x1xf32>
    %cst_71 = arith.constant 1.000000e+00 : f32
    %122 = vector.broadcast %cst_71 : f32 to vector<2x1xf32>
    %123 = arith.maximumf %121, %122 : vector<2x1xf32>
    %124 = tpu.reciprocal %123 : vector<2x1xf32> -> vector<2x1xf32>
    %125 = vector.broadcast %124 : vector<2x1xf32> to vector<2x128xf32>
    %126 = arith.mulf %119, %125 : vector<2x128xf32>
    %127 = arith.truncf %126 : vector<2x128xf32> to vector<2x128xbf16>
    %c12 = arith.constant 12 : index
    %c0_72 = arith.constant 0 : index
    %c0_73 = arith.constant 0 : index
    %128 = vector.load %arg4[%c12, %c0_72, %c0_73] : memref<15x128x128xbf16, #tpu.memory_space<vmem>>, vector<1x128x128xbf16>
    %129 = vector.shape_cast %128 : vector<1x128x128xbf16> to vector<128x128xbf16>
    %cst_74 = arith.constant dense<0.000000e+00> : vector<2x128xf32>
    %130 = tpu.matmul %5, %129, %cst_74 {dimension_numbers = #tpu.dot_dimension_numbers<[1], [0], [0], [1], [0, 0, 1, 1], [], []>} : vector<2x128xbf16>, vector<128x128xbf16>, vector<2x128xf32> -> vector<2x128xf32>
    %c13 = arith.constant 13 : index
    %c0_75 = arith.constant 0 : index
    %c0_76 = arith.constant 0 : index
    %131 = vector.load %arg4[%c13, %c0_75, %c0_76] : memref<15x128x128xbf16, #tpu.memory_space<vmem>>, vector<1x128x128xbf16>
    %132 = vector.shape_cast %131 : vector<1x128x128xbf16> to vector<128x128xbf16>
    %cst_77 = arith.constant dense<0.000000e+00> : vector<2x128xf32>
    %133 = tpu.matmul %127, %132, %cst_77 {dimension_numbers = #tpu.dot_dimension_numbers<[1], [0], [0], [1], [0, 0, 1, 1], [], []>} : vector<2x128xbf16>, vector<128x128xbf16>, vector<2x128xf32> -> vector<2x128xf32>
    %134 = arith.addf %130, %133 : vector<2x128xf32>
    %135 = vector.extract_strided_slice %6 {offsets = [6, 0], sizes = [1, 128], strides = [1, 1]} : vector<8x128xf32> to vector<1x128xf32>
    %136 = vector.broadcast %135 : vector<1x128xf32> to vector<2x128xf32>
    %137 = arith.addf %134, %136 : vector<2x128xf32>
    %cst_78 = arith.constant 0.000000e+00 : f32
    %138 = vector.broadcast %cst_78 : f32 to vector<2x128xf32>
    %139 = arith.maximumf %137, %138 : vector<2x128xf32>
    %140 = arith.truncf %139 : vector<2x128xf32> to vector<2x128xbf16>
    %c14 = arith.constant 14 : index
    %c0_79 = arith.constant 0 : index
    %c0_80 = arith.constant 0 : index
    %141 = vector.load %arg4[%c14, %c0_79, %c0_80] : memref<15x128x128xbf16, #tpu.memory_space<vmem>>, vector<1x128x128xbf16>
    %142 = vector.shape_cast %141 : vector<1x128x128xbf16> to vector<128x128xbf16>
    %cst_81 = arith.constant dense<0.000000e+00> : vector<2x128xf32>
    %143 = tpu.matmul %140, %142, %cst_81 {dimension_numbers = #tpu.dot_dimension_numbers<[1], [0], [0], [1], [0, 0, 1, 1], [], []>} : vector<2x128xbf16>, vector<128x128xbf16>, vector<2x128xf32> -> vector<2x128xf32>
    %144 = vector.extract_strided_slice %6 {offsets = [7, 0], sizes = [1, 128], strides = [1, 1]} : vector<8x128xf32> to vector<1x128xf32>
    %145 = vector.broadcast %144 : vector<1x128xf32> to vector<2x128xf32>
    %146 = arith.addf %143, %145 : vector<2x128xf32>
    %c0_82 = arith.constant 0 : index
    %c0_83 = arith.constant 0 : index
    %147 = vector.load %arg8[%c0_82, %c0_83] : memref<2x128xf32, #tpu.memory_space<vmem>>, vector<2x128xf32>
    tpu.vector_store %arg8[%c0_82, %c0_83], %146 {strides = array<i32>} : memref<2x128xf32, #tpu.memory_space<vmem>>, vector<2x128xf32>,
    return
  }
}

</mosaic_0001>

<llo_original>
// kernel: meta_layer_forward.1
$region0: #{meta_layer_forward.1}
  #allocation0 [shape = 'u32[]', space=smem, size = 0x4, offset = 0x4, fixed_abs, tag = 'smem constant byte address 0x4 - core index']
  #allocation1 [shape = 'u32[144,128]{1,0:T(1,128)}', space=vmem, size = 0x12000, scoped, tag = 'internal scratch']
  %s0 = inlined_call_operand.vmem [shape: s32[72,1], index: 0, kind: input, shape index: {}]
  %s1 = inlined_call_operand.vmem [shape: bf16[12,128], index: 1, kind: input, shape index: {}]
  %s2 = inlined_call_operand.vmem [shape: bf16[24,128], index: 2, kind: input, shape index: {}]
  %s3 = inlined_call_operand.vmem [shape: bf16[2,128], index: 3, kind: input, shape index: {}]
  %s4 = inlined_call_operand.hbm [shape: bf16[15,128,128], index: 4, kind: input, shape index: {}]
  %s5 = inlined_call_operand.vmem [shape: f32[8,128], index: 5, kind: input, shape index: {}]
  %s6 = inlined_call_operand.vmem [shape: f32[12,128], index: 6, kind: output, shape index: {0}]
  %s7 = inlined_call_operand.vmem [shape: f32[24,128], index: 7, kind: output, shape index: {1}]
  %s8 = inlined_call_operand.hbm [shape: f32[2,128], index: 8, kind: output, shape index: {2}]
  %9 = xla_tuple %s6, %s7, %s8
  %s10 = sld [smem:[#allocation0]]
  $region54: #{meta_layer_forward.1} parent=0
    _
  %s12 = ssub.s32 1, %s10
  %s13 = scalar_select 0, %s12, %s10
  $region1: #{meta_layer_forward.1} parent=0
    #allocation2 [shape = 'u8[491520]{0}', space=vmem, size = 0x78000, scoped, tag = 'input window, operand 4, single buffered']
    #allocation3 [shape = 's32[1]{0}', space=sflag, size = 0x4, scoped, tag = 'scoped memory for meta_layer_forward.1']
    #allocation4 [shape = 's32[1]{0}', space=sflag, size = 0x4, scoped, tag = 'scoped memory for meta_layer_forward.1']
    #allocation5 [shape = 'u8[1024]{0}', space=vmem, size = 0x400, scoped, tag = 'output window, operand 2, single buffered']
    %14 = vsyncpa [#allocation3], 0
    %15 = vsyncpa [#allocation4], 0
    // Predicated region
    $region2: #{meta_layer_forward.1} parent=1 // pred_check
      _
    $region3: #{meta_layer_forward.1} parent=1 // pred_check_branch
      %17 = sbr.rel (0) target = $region5
    $region4: #{meta_layer_forward.1} parent=1 // pred_region
      _
    $region5: #{meta_layer_forward.1} parent=1 // pred_fallthru
      _
    // Predicated region
    $region6: #{meta_layer_forward.1} parent=1 // pred_check
      _
    $region7: #{meta_layer_forward.1} parent=1 // pred_check_branch
      %19 = sbr.rel (0) target = $region9
    $region8: #{meta_layer_forward.1} parent=1 // pred_region
      _
    $region9: #{meta_layer_forward.1} parent=1 // pred_fallthru
      _
    // Predicated region
    $region10: #{meta_layer_forward.1} parent=1 // pred_check
      _
    $region11: #{meta_layer_forward.1} parent=1 // pred_check_branch
      %21 = sbr.rel (0) target = $region13
    $region12: #{meta_layer_forward.1} parent=1 // pred_region
      _
    $region13: #{meta_layer_forward.1} parent=1 // pred_fallthru
      _
    // Predicated region
    $region14: #{meta_layer_forward.1} parent=1 // pred_check
      _
    $region15: #{meta_layer_forward.1} parent=1 // pred_check_branch
      %23 = sbr.rel (0) target = $region17
    $region16: #{meta_layer_forward.1} parent=1 // pred_region
      _
    $region17: #{meta_layer_forward.1} parent=1 // pred_fallthru
      _
    // Predicated region
    $region18: #{meta_layer_forward.1} parent=1 // pred_check
      _
    $region19: #{meta_layer_forward.1} parent=1 // pred_check_branch
      %25 = sbr.rel (0) target = $region21
    $region20: #{meta_layer_forward.1} parent=1 // pred_region
      %s27 = ssub.s32 15360, 15360
      %28 = vsyncadd [#allocation3], %s27
      %s29 = sshll.u32 [#allocation2], 4
      %s30 = int_to_ptr.vmem [resolvable:$true] %s29
      %35 = dma.hbm_to_vmem [thread:$0]  %s4, 15360, %s30, [#allocation3], 64, 64, 4
    $region21: #{meta_layer_forward.1} parent=1 // pred_fallthru
      _
    // Predicated region
    $region22: #{meta_layer_forward.1} parent=1 // pred_check
      _
    $region23: #{meta_layer_forward.1} parent=1 // pred_check_branch
      %37 = sbr.rel (0) target = $region25
    $region24: #{meta_layer_forward.1} parent=1 // pred_region
      _
    $region25: #{meta_layer_forward.1} parent=1 // pred_fallthru
      _
    // Predicated region
    $region26: #{meta_layer_forward.1} parent=1 // pred_check
      _
    $region27: #{meta_layer_forward.1} parent=1 // pred_check_branch
      %39 = sbr.rel (0) target = $region29
    $region28: #{meta_layer_forward.1} parent=1 // pred_region
      %40 = dma.done [#allocation3], 15360
    $region29: #{meta_layer_forward.1} parent=1 // pred_fallthru
      _
    %v43 = vld [vmem:[%s0] sm:$0xff]
    %v44 = vld [vmem:[%s0 + $0x8] sm:$0xff]
    %v45 = vld [vmem:[%s0 + $0x10] sm:$0xff]
    %v46 = vld [vmem:[%s0 + $0x18] sm:$0xff]
    %v47 = vld [vmem:[%s0 + $0x20] sm:$0xff]
    %v48 = vld [vmem:[%s0 + $0x28] sm:$0xff]
    %v49 = vld [vmem:[%s0 + $0x30] sm:$0xff]
    %v50 = vld [vmem:[%s0 + $0x38] sm:$0xf]
    %v51 = vld [vmem:[%s1] sm:$0xf]
    %v52 = vld [vmem:[%s1 + $0x4] sm:$0x3]
    %v53 = vld [vmem:[%s2] sm:$0xf]
    %v54 = vld [vmem:[%s2 + $0x4] sm:$0xf]
    %v55 = vld [vmem:[%s2 + $0x8] sm:$0xf]
    %v56 = vld [vmem:[%s3] sm:$0x1]
    %v57 = vld [vmem:[%s5] sm:$0xff]
    %v58 = vlaneseq
    %v59 = vand.u32 %v58, 127
    %60 = vset.pattern.permute.xlu0 0
    %61 = vperm.xlu0 %60, %v43
    %v62 = vpop.permute.xlu0 %61
    %63 = vset.pattern.permute.xlu0 0
    %64 = vperm.xlu0 %63, %v44
    %v65 = vpop.permute.xlu0 %64
    %66 = vset.pattern.permute.xlu0 0
    %67 = vperm.xlu0 %66, %v45
    %v68 = vpop.permute.xlu0 %67
    %vm69 = vcmp.eq.s32.totalorder %v59, %v62
    %vm70 = vcmp.eq.s32.totalorder %v59, %v65
    %vm71 = vcmp.eq.s32.totalorder %v59, %v68
    %v72 = vsel %vm69, 1.0, 0.0
    %v73 = vsel %vm70, 1.0, 0.0
    %v74 = vsel %vm71, 1.0, 0.0
    %v75 = vpack.c.bf16 %v73, %v72
    %v76 = vpack.c.bf16 %v74, %v74
    %77 = vset.pattern.permute.xlu0 0
    %78 = vperm.xlu0 %77, %v46
    %v79 = vpop.permute.xlu0 %78
    %80 = vset.pattern.permute.xlu0 0
    %81 = vperm.xlu0 %80, %v47
    %v82 = vpop.permute.xlu0 %81
    %83 = vset.pattern.permute.xlu0 0
    %84 = vperm.xlu0 %83, %v48
    %v85 = vpop.permute.xlu0 %84
    %vm86 = vcmp.eq.s32.totalorder %v59, %v79
    %vm87 = vcmp.eq.s32.totalorder %v59, %v82
    %vm88 = vcmp.eq.s32.totalorder %v59, %v85
    %v89 = vsel %vm86, 1.0, 0.0
    %v90 = vsel %vm87, 1.0, 0.0
    %v91 = vsel %vm88, 1.0, 0.0
    %v92 = vpack.c.bf16 %v90, %v89
    %v93 = vpack.c.bf16 %v91, %v91
    %94 = vset.pattern.permute.xlu0 0
    %95 = vperm.xlu0 %94, %v49
    %v96 = vpop.permute.xlu0 %95
    %97 = vset.pattern.permute.xlu0 0
    %98 = vperm.xlu0 %97, %v50
    %v99 = vpop.permute.xlu0 %98
    %vm100 = vcmp.eq.s32.totalorder %v59, %v96
    %vm101 = vcmp.eq.s32.totalorder %v59, %v99
    %v102 = vsel %vm100, 1.0, 0.0
    %v103 = vsel %vm101, 1.0, 0.0
    %v104 = vpack.c.bf16 %v103, %v102
    %v107 = vunpack.c.l.b16 %v51
    %v108 = vunpack.c.l.b16 %v52
    %v109 = vpack.c.b16 %v108, %v107
    %vm110 = vcmask 97280
    %v112 = vsel %vm110, %v75, 0
    %v115 = vsel %vm110, %v76, 0
    %vm117 = vcmask 1045504
    %v119 = vsel %vm117, %v109, 0
    %121 = vmatprep.subr.bf16.mxu0 0
    %122 = vmatpush1.bf16.msra.mxu0 0
    %123 = vmatprep.subr.bf16.mxu0 0
    %124 = vmatpush1.bf16.msra.mxu0 0
    %125 = vmatprep.subr.bf16.mxu0 0
    %126 = vmatpush1.bf16.msra.mxu0 0
    %127 = vmatprep.subr.bf16.mxu0 0
    %128 = vmatpush1.bf16.msra.mxu0 0
    %129 = vmatprep.subr.bf16.mxu0 0
    %130 = vmatpush1.bf16.msra.mxu0 0
    %131 = vmatprep.subr.bf16.mxu0 0
    %132 = vmatpush1.bf16.msra.mxu0 0
    %133 = vmatprep.subr.bf16.mxu0 0
    %134 = vmatpush1.bf16.msra.mxu0 0
    %135 = vmatprep.subr.bf16.mxu0 0
    %136 = vmatpush1.bf16.msra.mxu0 %v119
    %137 = vmatprep.subr.bf16.mxu0 0
    %138 = vmatpush2.bf16.msra.mxu0 0
    %139 = vmatprep.subr.bf16.mxu0 0
    %140 = vmatpush2.bf16.msra.mxu0 0
    %141 = vmatprep.subr.bf16.mxu0 0
    %142 = vmatpush2.bf16.msra.mxu0 0
    %143 = vmatprep.subr.bf16.mxu0 0
    %144 = vmatpush2.bf16.msra.mxu0 0
    %145 = vmatprep.subr.bf16.mxu0 0
    %146 = vmatpush2.bf16.msra.mxu0 0
    %147 = vmatprep.subr.bf16.mxu0 0
    %148 = vmatpush2.bf16.msra.mxu0 0
    %149 = vmatprep.subr.bf16.mxu0 0
    %150 = vmatpush2.bf16.msra.mxu0 0
    %151 = vmatprep.subr.bf16.mxu0 0
    %152 = vmatpush2.bf16.msra.mxu0 0
    %153 = vmatprep.mubr.bf16.mxu0 0
    %154 = vmatmul.mubr.bf16.gmra.mxu0 %v112
    %v155 = vpop.f32.mrf.mxu0
    %v156 = vadd.f32 0.0, %v155
    %v157 = vpop.f32.mrf.mxu0
    %v158 = vpop.f32.mrf.mxu0
    %v159 = vadd.f32 0.0, %v158
    %v160 = vpop.f32.mrf.mxu0
    %161 = vmatprep.mubr.bf16.mxu0 0
    %162 = vmatmul.mubr.bf16.gmra.mxu0 %v115
    %v163 = vpop.f32.mrf.mxu0
    %v164 = vadd.f32 0.0, %v163
    %v165 = vpop.f32.mrf.mxu0
    %v166 = vpop.f32.mrf.mxu0
    %v167 = vpop.f32.mrf.mxu0
    %168 = vdwg.mxu0
    %v169 = vpack.c.bf16 %v159, %v156
    %v170 = vpack.c.bf16 %v164, %v164
    %v172 = vsel %vm110, %v92, 0
    %v175 = vsel %vm110, %v93, 0
    %177 = vmatprep.subr.bf16.mxu0 0
    %178 = vmatpush1.bf16.msra.mxu0 0
    %179 = vmatprep.subr.bf16.mxu0 0
    %180 = vmatpush1.bf16.msra.mxu0 0
    %181 = vmatprep.subr.bf16.mxu0 0
    %182 = vmatpush1.bf16.msra.mxu0 0
    %183 = vmatprep.subr.bf16.mxu0 0
    %184 = vmatpush1.bf16.msra.mxu0 0
    %185 = vmatprep.subr.bf16.mxu0 0
    %186 = vmatpush1.bf16.msra.mxu0 0
    %187 = vmatprep.subr.bf16.mxu0 0
    %188 = vmatpush1.bf16.msra.mxu0 0
    %189 = vmatprep.subr.bf16.mxu0 0
    %190 = vmatpush1.bf16.msra.mxu0 0
    %191 = vmatprep.subr.bf16.mxu0 0
    %192 = vmatpush1.bf16.msra.mxu0 %v119
    %193 = vmatprep.subr.bf16.mxu0 0
    %194 = vmatpush2.bf16.msra.mxu0 0
    %195 = vmatprep.subr.bf16.mxu0 0
    %196 = vmatpush2.bf16.msra.mxu0 0
    %197 = vmatprep.subr.bf16.mxu0 0
    %198 = vmatpush2.bf16.msra.mxu0 0
    %199 = vmatprep.subr.bf16.mxu0 0
    %200 = vmatpush2.bf16.msra.mxu0 0
    %201 = vmatprep.subr.bf16.mxu0 0
    %202 = vmatpush2.bf16.msra.mxu0 0
    %203 = vmatprep.subr.bf16.mxu0 0
    %204 = vmatpush2.bf16.msra.mxu0 0
    %205 = vmatprep.subr.bf16.mxu0 0
    %206 = vmatpush2.bf16.msra.mxu0 0
    %207 = vmatprep.subr.bf16.mxu0 0
    %208 = vmatpush2.bf16.msra.mxu0 0
    %209 = vmatprep.mubr.bf16.mxu0 0
    %210 = vmatmul.mubr.bf16.gmra.mxu0 %v172
    %v211 = vpop.f32.mrf.mxu0
    %v212 = vadd.f32 0.0, %v211
    %v213 = vpop.f32.mrf.mxu0
    %v214 = vpop.f32.mrf.mxu0
    %v215 = vadd.f32 0.0, %v214
    %v216 = vpop.f32.mrf.mxu0
    %217 = vmatprep.mubr.bf16.mxu0 0
    %218 = vmatmul.mubr.bf16.gmra.mxu0 %v175
    %v219 = vpop.f32.mrf.mxu0
    %v220 = vadd.f32 0.0, %v219
    %v221 = vpop.f32.mrf.mxu0
    %v222 = vpop.f32.mrf.mxu0
    %v223 = vpop.f32.mrf.mxu0
    %224 = vdwg.mxu0
    %v225 = vpack.c.bf16 %v215, %v212
    %v226 = vpack.c.bf16 %v220, %v220
    %vm227 = vcmask 15360
    %v229 = vsel %vm227, %v104, 0
    %vm231 = vcmask 1040384
    %v233 = vsel %vm231, %v56, 0
    %235 = vmatprep.subr.bf16.mxu0 0
    %236 = vmatpush1.bf16.msra.mxu0 0
    %237 = vmatprep.subr.bf16.mxu0 0
    %238 = vmatpush1.bf16.msra.mxu0 0
    %239 = vmatprep.subr.bf16.mxu0 0
    %240 = vmatpush1.bf16.msra.mxu0 0
    %241 = vmatprep.subr.bf16.mxu0 0
    %242 = vmatpush1.bf16.msra.mxu0 0
    %243 = vmatprep.subr.bf16.mxu0 0
    %244 = vmatpush1.bf16.msra.mxu0 0
    %245 = vmatprep.subr.bf16.mxu0 0
    %246 = vmatpush1.bf16.msra.mxu0 0
    %247 = vmatprep.subr.bf16.mxu0 0
    %248 = vmatpush1.bf16.msra.mxu0 0
    %249 = vmatprep.subr.bf16.mxu0 0
    %250 = vmatpush1.bf16.msra.mxu0 %v233
    %251 = vmatprep.subr.bf16.mxu0 0
    %252 = vmatpush2.bf16.msra.mxu0 0
    %253 = vmatprep.subr.bf16.mxu0 0
    %254 = vmatpush2.bf16.msra.mxu0 0
    %255 = vmatprep.subr.bf16.mxu0 0
    %256 = vmatpush2.bf16.msra.mxu0 0
    %257 = vmatprep.subr.bf16.mxu0 0
    %258 = vmatpush2.bf16.msra.mxu0 0
    %259 = vmatprep.subr.bf16.mxu0 0
    %260 = vmatpush2.bf16.msra.mxu0 0
    %261 = vmatprep.subr.bf16.mxu0 0
    %262 = vmatpush2.bf16.msra.mxu0 0
    %263 = vmatprep.subr.bf16.mxu0 0
    %264 = vmatpush2.bf16.msra.mxu0 0
    %265 = vmatprep.subr.bf16.mxu0 0
    %266 = vmatpush2.bf16.msra.mxu0 0
    %267 = vmatprep.mubr.bf16.mxu0 0
    %268 = vmatmul.mubr.bf16.gmra.mxu0 %v229
    %v269 = vpop.f32.mrf.mxu0
    %v270 = vadd.f32 0.0, %v269
    %v271 = vpop.f32.mrf.mxu0
    %v272 = vpop.f32.mrf.mxu0
    %v273 = vadd.f32 0.0, %v272
    %v274 = vpop.f32.mrf.mxu0
    %275 = vdwg.mxu0
    %v276 = vpack.c.bf16 %v273, %v270
    %v278 = vsel %vm117, %v276, 0
    %280 = vmatprep.subr.bf16.mxu0 0
    %281 = vmatpush1.bf16.msra.mxu0 0
    %282 = vmatprep.subr.bf16.mxu0 0
    %283 = vmatpush1.bf16.msra.mxu0 0
    %284 = vmatprep.subr.bf16.mxu0 0
    %285 = vmatpush1.bf16.msra.mxu0 0
    %286 = vmatprep.subr.bf16.mxu0 0
    %287 = vmatpush1.bf16.msra.mxu0 0
    %288 = vmatprep.subr.bf16.mxu0 0
    %289 = vmatpush1.bf16.msra.mxu0 0
    %290 = vmatprep.subr.bf16.mxu0 0
    %291 = vmatpush1.bf16.msra.mxu0 0
    %292 = vmatprep.subr.bf16.mxu0 0
    %293 = vmatpush1.bf16.msra.mxu0 0
    %294 = vmatprep.subr.bf16.mxu0 0
    %295 = vmatpush1.bf16.msra.mxu0 %v278
    %296 = vmatprep.subr.bf16.mxu0 0
    %297 = vmatpush2.bf16.msra.mxu0 0
    %298 = vmatprep.subr.bf16.mxu0 0
    %299 = vmatpush2.bf16.msra.mxu0 0
    %300 = vmatprep.subr.bf16.mxu0 0
    %301 = vmatpush2.bf16.msra.mxu0 0
    %302 = vmatprep.subr.bf16.mxu0 0
    %303 = vmatpush2.bf16.msra.mxu0 0
    %304 = vmatprep.subr.bf16.mxu0 0
    %305 = vmatpush2.bf16.msra.mxu0 0
    %306 = vmatprep.subr.bf16.mxu0 0
    %307 = vmatpush2.bf16.msra.mxu0 0
    %308 = vmatprep.subr.bf16.mxu0 0
    %309 = vmatpush2.bf16.msra.mxu0 0
    %310 = vmatprep.subr.bf16.mxu0 0
    %311 = vmatpush2.bf16.msra.mxu0 0
    %312 = vmatprep.mubr.bf16.mxu0 0
    %313 = vmatmul.mubr.bf16.gmra.mxu0 %v112
    %v314 = vpop.f32.mrf.mxu0
    %v315 = vadd.f32 0.0, %v314
    %v316 = vpop.f32.mrf.mxu0
    %v317 = vpop.f32.mrf.mxu0
    %v318 = vadd.f32 0.0, %v317
    %v319 = vpop.f32.mrf.mxu0
    %320 = vmatprep.mubr.bf16.mxu0 0
    %321 = vmatmul.mubr.bf16.gmra.mxu0 %v115
    %v322 = vpop.f32.mrf.mxu0
    %v323 = vadd.f32 0.0, %v322
    %v324 = vpop.f32.mrf.mxu0
    %v325 = vpop.f32.mrf.mxu0
    %v326 = vpop.f32.mrf.mxu0
    %327 = vdwg.mxu0
    %v328 = vpack.c.bf16 %v318, %v315
    %v329 = vpack.c.bf16 %v323, %v323
    %v330 = vld [vmem:[#allocation2] sm:$0xf]
    %v331 = vld [vmem:[#allocation2 + $0x4] sm:$0xf]
    %v332 = vld [vmem:[#allocation2 + $0x8] sm:$0xf]
    %v333 = vld [vmem:[#allocation2 + $0xc] sm:$0xf]
    %v334 = vld [vmem:[#allocation2 + $0x10] sm:$0xf]
    %v335 = vld [vmem:[#allocation2 + $0x14] sm:$0xf]
    %v336 = vld [vmem:[#allocation2 + $0x18] sm:$0xf]
    %v337 = vld [vmem:[#allocation2 + $0x1c] sm:$0xf]
    %v338 = vld [vmem:[#allocation2 + $0x20] sm:$0xf]
    %v339 = vld [vmem:[#allocation2 + $0x24] sm:$0xf]
    %v340 = vld [vmem:[#allocation2 + $0x28] sm:$0xf]
    %v341 = vld [vmem:[#allocation2 + $0x2c] sm:$0xf]
    %v342 = vld [vmem:[#allocation2 + $0x30] sm:$0xf]
    %v343 = vld [vmem:[#allocation2 + $0x34] sm:$0xf]
    %v344 = vld [vmem:[#allocation2 + $0x38] sm:$0xf]
    %v345 = vld [vmem:[#allocation2 + $0x3c] sm:$0xf]
    %s346 = scalar_lea.vmem [#allocation2], 64
    %v347 = vld [vmem:[%s346] sm:$0xf]
    %v348 = vld [vmem:[%s346 + $0x4] sm:$0xf]
    %v349 = vld [vmem:[%s346 + $0x8] sm:$0xf]
    %v350 = vld [vmem:[%s346 + $0xc] sm:$0xf]
    %v351 = vld [vmem:[%s346 + $0x10] sm:$0xf]
    %v352 = vld [vmem:[%s346 + $0x14] sm:$0xf]
    %v353 = vld [vmem:[%s346 + $0x18] sm:$0xf]
    %v354 = vld [vmem:[%s346 + $0x1c] sm:$0xf]
    %v355 = vld [vmem:[%s346 + $0x20] sm:$0xf]
    %v356 = vld [vmem:[%s346 + $0x24] sm:$0xf]
    %v357 = vld [vmem:[%s346 + $0x28] sm:$0xf]
    %v358 = vld [vmem:[%s346 + $0x2c] sm:$0xf]
    %v359 = vld [vmem:[%s346 + $0x30] sm:$0xf]
    %v360 = vld [vmem:[%s346 + $0x34] sm:$0xf]
    %v361 = vld [vmem:[%s346 + $0x38] sm:$0xf]
    %v362 = vld [vmem:[%s346 + $0x3c] sm:$0xf]
    %v379 = vunpack.c.l.b16 %v347
    %v380 = vunpack.c.l.b16 %v348
    %v381 = vunpack.c.l.b16 %v349
    %v382 = vunpack.c.l.b16 %v350
    %v383 = vunpack.c.l.b16 %v351
    %v384 = vunpack.c.l.b16 %v352
    %v385 = vunpack.c.l.b16 %v353
    %v386 = vunpack.c.l.b16 %v354
    %v387 = vunpack.c.l.b16 %v355
    %v388 = vunpack.c.l.b16 %v356
    %v389 = vunpack.c.l.b16 %v357
    %v390 = vunpack.c.l.b16 %v358
    %v391 = vunpack.c.l.b16 %v359
    %v392 = vunpack.c.l.b16 %v360
    %v393 = vunpack.c.l.b16 %v361
    %v394 = vunpack.c.l.b16 %v362
    %v395 = vpack.c.b16 %v380, %v379
    %v396 = vpack.c.b16 %v382, %v381
    %v397 = vpack.c.b16 %v384, %v383
    %v398 = vpack.c.b16 %v386, %v385
    %v399 = vpack.c.b16 %v388, %v387
    %v400 = vpack.c.b16 %v390, %v389
    %v401 = vpack.c.b16 %v392, %v391
    %v402 = vpack.c.b16 %v394, %v393
    %411 = vmatprep.subr.bf16.mxu0 0
    %412 = vmatpush1.bf16.msra.mxu0 %v402
    %413 = vmatprep.subr.bf16.mxu0 0
    %414 = vmatpush1.bf16.msra.mxu0 %v401
    %415 = vmatprep.subr.bf16.mxu0 0
    %416 = vmatpush1.bf16.msra.mxu0 %v400
    %417 = vmatprep.subr.bf16.mxu0 0
    %418 = vmatpush1.bf16.msra.mxu0 %v399
    %419 = vmatprep.subr.bf16.mxu0 0
    %420 = vmatpush1.bf16.msra.mxu0 %v398
    %421 = vmatprep.subr.bf16.mxu0 0
    %422 = vmatpush1.bf16.msra.mxu0 %v397
    %423 = vmatprep.subr.bf16.mxu0 0
    %424 = vmatpush1.bf16.msra.mxu0 %v396
    %425 = vmatprep.subr.bf16.mxu0 0
    %426 = vmatpush1.bf16.msra.mxu0 %v395
    %427 = vmatprep.subr.bf16.mxu0 0
    %428 = vmatpush2.bf16.msra.mxu0 0
    %429 = vmatprep.subr.bf16.mxu0 0
    %430 = vmatpush2.bf16.msra.mxu0 0
    %431 = vmatprep.subr.bf16.mxu0 0
    %432 = vmatpush2.bf16.msra.mxu0 0
    %433 = vmatprep.subr.bf16.mxu0 0
    %434 = vmatpush2.bf16.msra.mxu0 0
    %435 = vmatprep.subr.bf16.mxu0 0
    %436 = vmatpush2.bf16.msra.mxu0 0
    %437 = vmatprep.subr.bf16.mxu0 0
    %438 = vmatpush2.bf16.msra.mxu0 0
    %439 = vmatprep.subr.bf16.mxu0 0
    %440 = vmatpush2.bf16.msra.mxu0 0
    %441 = vmatprep.subr.bf16.mxu0 0
    %442 = vmatpush2.bf16.msra.mxu0 0
    %443 = vmatprep.mubr.bf16.mxu0 0
    %444 = vmatmul.mubr.bf16.gmra.mxu0 %v225
    %v445 = vpop.f32.mrf.mxu0
    %v446 = vadd.f32 0.0, %v445
    %v447 = vpop.f32.mrf.mxu0
    %v448 = vpop.f32.mrf.mxu0
    %v449 = vadd.f32 0.0, %v448
    %v450 = vpop.f32.mrf.mxu0
    %451 = vmatprep.mubr.bf16.mxu0 0
    %452 = vmatmul.mubr.bf16.gmra.mxu0 %v226
    %v453 = vpop.f32.mrf.mxu0
    %v454 = vadd.f32 0.0, %v453
    %v455 = vpop.f32.mrf.mxu0
    %v456 = vpop.f32.mrf.mxu0
    %v457 = vpop.f32.mrf.mxu0
    %458 = vdwg.mxu0
    %v475 = vunpack.c.l.b16 %v330
    %v476 = vunpack.c.l.b16 %v331
    %v477 = vunpack.c.l.b16 %v332
    %v478 = vunpack.c.l.b16 %v333
    %v479 = vunpack.c.l.b16 %v334
    %v480 = vunpack.c.l.b16 %v335
    %v481 = vunpack.c.l.b16 %v336
    %v482 = vunpack.c.l.b16 %v337
    %v483 = vunpack.c.l.b16 %v338
    %v484 = vunpack.c.l.b16 %v339
    %v485 = vunpack.c.l.b16 %v340
    %v486 = vunpack.c.l.b16 %v341
    %v487 = vunpack.c.l.b16 %v342
    %v488 = vunpack.c.l.b16 %v343
    %v489 = vunpack.c.l.b16 %v344
    %v490 = vunpack.c.l.b16 %v345
    %v491 = vpack.c.b16 %v476, %v475
    %v492 = vpack.c.b16 %v478, %v477
    %v493 = vpack.c.b16 %v480, %v479
    %v494 = vpack.c.b16 %v482, %v481
    %v495 = vpack.c.b16 %v484, %v483
    %v496 = vpack.c.b16 %v486, %v485
    %v497 = vpack.c.b16 %v488, %v487
    %v498 = vpack.c.b16 %v490, %v489
    %507 = vmatprep.subr.bf16.mxu0 0
    %508 = vmatpush1.bf16.msra.mxu0 %v498
    %509 = vmatprep.subr.bf16.mxu0 0
    %510 = vmatpush1.bf16.msra.mxu0 %v497
    %511 = vmatprep.subr.bf16.mxu0 0
    %512 = vmatpush1.bf16.msra.mxu0 %v496
    %513 = vmatprep.subr.bf16.mxu0 0
    %514 = vmatpush1.bf16.msra.mxu0 %v495
    %515 = vmatprep.subr.bf16.mxu0 0
    %516 = vmatpush1.bf16.msra.mxu0 %v494
    %517 = vmatprep.subr.bf16.mxu0 0
    %518 = vmatpush1.bf16.msra.mxu0 %v493
    %519 = vmatprep.subr.bf16.mxu0 0
    %520 = vmatpush1.bf16.msra.mxu0 %v492
    %521 = vmatprep.subr.bf16.mxu0 0
    %522 = vmatpush1.bf16.msra.mxu0 %v491
    %523 = vmatprep.subr.bf16.mxu0 0
    %524 = vmatpush2.bf16.msra.mxu0 0
    %525 = vmatprep.subr.bf16.mxu0 0
    %526 = vmatpush2.bf16.msra.mxu0 0
    %527 = vmatprep.subr.bf16.mxu0 0
    %528 = vmatpush2.bf16.msra.mxu0 0
    %529 = vmatprep.subr.bf16.mxu0 0
    %530 = vmatpush2.bf16.msra.mxu0 0
    %531 = vmatprep.subr.bf16.mxu0 0
    %532 = vmatpush2.bf16.msra.mxu0 0
    %533 = vmatprep.subr.bf16.mxu0 0
    %534 = vmatpush2.bf16.msra.mxu0 0
    %535 = vmatprep.subr.bf16.mxu0 0
    %536 = vmatpush2.bf16.msra.mxu0 0
    %537 = vmatprep.subr.bf16.mxu0 0
    %538 = vmatpush2.bf16.msra.mxu0 0
    %539 = vmatprep.mubr.bf16.mxu0 0
    %540 = vmatmul.mubr.bf16.gmra.mxu0 %v169
    %v541 = vpop.f32.mrf.mxu0
    %v542 = vadd.f32 %v446, %v541
    %v543 = vpop.f32.mrf.mxu0
    %v544 = vpop.f32.mrf.mxu0
    %v545 = vadd.f32 %v449, %v544
    %v546 = vpop.f32.mrf.mxu0
    %547 = vmatprep.mubr.bf16.mxu0 0
    %548 = vmatmul.mubr.bf16.gmra.mxu0 %v170
    %v549 = vpop.f32.mrf.mxu0
    %v550 = vadd.f32 %v454, %v549
    %v551 = vpop.f32.mrf.mxu0
    %v552 = vpop.f32.mrf.mxu0
    %v553 = vpop.f32.mrf.mxu0
    %554 = vdwg.mxu0
    %s555 = scalar_lea.vmem [#allocation2], 128
    %v556 = vld [vmem:[%s555] sm:$0xf]
    %v557 = vld [vmem:[%s555 + $0x4] sm:$0xf]
    %v558 = vld [vmem:[%s555 + $0x8] sm:$0xf]
    %v559 = vld [vmem:[%s555 + $0xc] sm:$0xf]
    %v560 = vld [vmem:[%s555 + $0x10] sm:$0xf]
    %v561 = vld [vmem:[%s555 + $0x14] sm:$0xf]
    %v562 = vld [vmem:[%s555 + $0x18] sm:$0xf]
    %v563 = vld [vmem:[%s555 + $0x1c] sm:$0xf]
    %v564 = vld [vmem:[%s555 + $0x20] sm:$0xf]
    %v565 = vld [vmem:[%s555 + $0x24] sm:$0xf]
    %v566 = vld [vmem:[%s555 + $0x28] sm:$0xf]
    %v567 = vld [vmem:[%s555 + $0x2c] sm:$0xf]
    %v568 = vld [vmem:[%s555 + $0x30] sm:$0xf]
    %v569 = vld [vmem:[%s555 + $0x34] sm:$0xf]
    %v570 = vld [vmem:[%s555 + $0x38] sm:$0xf]
    %v571 = vld [vmem:[%s555 + $0x3c] sm:$0xf]
    %v575 = vunpack.c.l.b16 %v53
    %v576 = vunpack.c.l.b16 %v54
    %v577 = vunpack.c.l.b16 %v55
    %v578 = vpack.c.b16 %v576, %v575
    %v579 = vpack.c.b16 %v577, %v577
    %v598 = vunpack.c.l.b16 %v556
    %v599 = vunpack.c.l.b16 %v557
    %v600 = vunpack.c.l.b16 %v558
    %v601 = vunpack.c.l.b16 %v559
    %v602 = vunpack.c.l.b16 %v560
    %v603 = vunpack.c.l.b16 %v561
    %v604 = vunpack.c.l.b16 %v562
    %v605 = vunpack.c.l.b16 %v563
    %v606 = vunpack.c.l.b16 %v564
    %v607 = vunpack.c.l.b16 %v565
    %v608 = vunpack.c.l.b16 %v566
    %v609 = vunpack.c.l.b16 %v567
    %v610 = vunpack.c.l.b16 %v568
    %v611 = vunpack.c.l.b16 %v569
    %v612 = vunpack.c.l.b16 %v570
    %v613 = vunpack.c.l.b16 %v571
    %v614 = vpack.c.b16 %v599, %v598
    %v615 = vpack.c.b16 %v601, %v600
    %v616 = vpack.c.b16 %v603, %v602
    %v617 = vpack.c.b16 %v605, %v604
    %v618 = vpack.c.b16 %v607, %v606
    %v619 = vpack.c.b16 %v609, %v608
    %v620 = vpack.c.b16 %v611, %v610
    %v621 = vpack.c.b16 %v613, %v612
    %630 = vmatprep.subr.bf16.mxu0 0
    %631 = vmatpush1.bf16.msra.mxu0 %v621
    %632 = vmatprep.subr.bf16.mxu0 0
    %633 = vmatpush1.bf16.msra.mxu0 %v620
    %634 = vmatprep.subr.bf16.mxu0 0
    %635 = vmatpush1.bf16.msra.mxu0 %v619
    %636 = vmatprep.subr.bf16.mxu0 0
    %637 = vmatpush1.bf16.msra.mxu0 %v618
    %638 = vmatprep.subr.bf16.mxu0 0
    %639 = vmatpush1.bf16.msra.mxu0 %v617
    %640 = vmatprep.subr.bf16.mxu0 0
    %641 = vmatpush1.bf16.msra.mxu0 %v616
    %642 = vmatprep.subr.bf16.mxu0 0
    %643 = vmatpush1.bf16.msra.mxu0 %v615
    %644 = vmatprep.subr.bf16.mxu0 0
    %645 = vmatpush1.bf16.msra.mxu0 %v614
    %646 = vmatprep.subr.bf16.mxu0 0
    %647 = vmatpush2.bf16.msra.mxu0 0
    %648 = vmatprep.subr.bf16.mxu0 0
    %649 = vmatpush2.bf16.msra.mxu0 0
    %650 = vmatprep.subr.bf16.mxu0 0
    %651 = vmatpush2.bf16.msra.mxu0 0
    %652 = vmatprep.subr.bf16.mxu0 0
    %653 = vmatpush2.bf16.msra.mxu0 0
    %654 = vmatprep.subr.bf16.mxu0 0
    %655 = vmatpush2.bf16.msra.mxu0 0
    %656 = vmatprep.subr.bf16.mxu0 0
    %657 = vmatpush2.bf16.msra.mxu0 0
    %658 = vmatprep.subr.bf16.mxu0 0
    %659 = vmatpush2.bf16.msra.mxu0 0
    %660 = vmatprep.subr.bf16.mxu0 0
    %661 = vmatpush2.bf16.msra.mxu0 0
    %662 = vmatprep.mubr.bf16.mxu0 0
    %663 = vmatmul.mubr.bf16.gmra.mxu0 %v578
    %v664 = vpop.f32.mrf.mxu0
    %v665 = vadd.f32 0.0, %v664
    %v666 = vpop.f32.mrf.mxu0
    %v667 = vpop.f32.mrf.mxu0
    %v668 = vadd.f32 0.0, %v667
    %v669 = vpop.f32.mrf.mxu0
    %670 = vmatprep.mubr.bf16.mxu0 0
    %671 = vmatmul.mubr.bf16.gmra.mxu0 %v579
    %v672 = vpop.f32.mrf.mxu0
    %v673 = vadd.f32 0.0, %v672
    %v674 = vpop.f32.mrf.mxu0
    %v675 = vpop.f32.mrf.mxu0
    %v676 = vpop.f32.mrf.mxu0
    %677 = vdwg.mxu0
    %v678 = vadd.f32 %v542, %v665
    %v679 = vadd.f32 %v545, %v668
    %v680 = vadd.f32 %v550, %v673
    %s681 = scalar_lea.vmem [#allocation2], 192
    %v682 = vld [vmem:[%s681] sm:$0xf]
    %v683 = vld [vmem:[%s681 + $0x4] sm:$0xf]
    %v684 = vld [vmem:[%s681 + $0x8] sm:$0xf]
    %v685 = vld [vmem:[%s681 + $0xc] sm:$0xf]
    %v686 = vld [vmem:[%s681 + $0x10] sm:$0xf]
    %v687 = vld [vmem:[%s681 + $0x14] sm:$0xf]
    %v688 = vld [vmem:[%s681 + $0x18] sm:$0xf]
    %v689 = vld [vmem:[%s681 + $0x1c] sm:$0xf]
    %v690 = vld [vmem:[%s681 + $0x20] sm:$0xf]
    %v691 = vld [vmem:[%s681 + $0x24] sm:$0xf]
    %v692 = vld [vmem:[%s681 + $0x28] sm:$0xf]
    %v693 = vld [vmem:[%s681 + $0x2c] sm:$0xf]
    %v694 = vld [vmem:[%s681 + $0x30] sm:$0xf]
    %v695 = vld [vmem:[%s681 + $0x34] sm:$0xf]
    %v696 = vld [vmem:[%s681 + $0x38] sm:$0xf]
    %v697 = vld [vmem:[%s681 + $0x3c] sm:$0xf]
    %v714 = vunpack.c.l.b16 %v682
    %v715 = vunpack.c.l.b16 %v683
    %v716 = vunpack.c.l.b16 %v684
    %v717 = vunpack.c.l.b16 %v685
    %v718 = vunpack.c.l.b16 %v686
    %v719 = vunpack.c.l.b16 %v687
    %v720 = vunpack.c.l.b16 %v688
    %v721 = vunpack.c.l.b16 %v689
    %v722 = vunpack.c.l.b16 %v690
    %v723 = vunpack.c.l.b16 %v691
    %v724 = vunpack.c.l.b16 %v692
    %v725 = vunpack.c.l.b16 %v693
    %v726 = vunpack.c.l.b16 %v694
    %v727 = vunpack.c.l.b16 %v695
    %v728 = vunpack.c.l.b16 %v696
    %v729 = vunpack.c.l.b16 %v697
    %v730 = vpack.c.b16 %v715, %v714
    %v731 = vpack.c.b16 %v717, %v716
    %v732 = vpack.c.b16 %v719, %v718
    %v733 = vpack.c.b16 %v721, %v720
    %v734 = vpack.c.b16 %v723, %v722
    %v735 = vpack.c.b16 %v725, %v724
    %v736 = vpack.c.b16 %v727, %v726
    %v737 = vpack.c.b16 %v729, %v728
    %746 = vmatprep.subr.bf16.mxu0 0
    %747 = vmatpush1.bf16.msra.mxu0 %v737
    %748 = vmatprep.subr.bf16.mxu0 0
    %749 = vmatpush1.bf16.msra.mxu0 %v736
    %750 = vmatprep.subr.bf16.mxu0 0
    %751 = vmatpush1.bf16.msra.mxu0 %v735
    %752 = vmatprep.subr.bf16.mxu0 0
    %753 = vmatpush1.bf16.msra.mxu0 %v734
    %754 = vmatprep.subr.bf16.mxu0 0
    %755 = vmatpush1.bf16.msra.mxu0 %v733
    %756 = vmatprep.subr.bf16.mxu0 0
    %757 = vmatpush1.bf16.msra.mxu0 %v732
    %758 = vmatprep.subr.bf16.mxu0 0
    %759 = vmatpush1.bf16.msra.mxu0 %v731
    %760 = vmatprep.subr.bf16.mxu0 0
    %761 = vmatpush1.bf16.msra.mxu0 %v730
    %762 = vmatprep.subr.bf16.mxu0 0
    %763 = vmatpush2.bf16.msra.mxu0 0
    %764 = vmatprep.subr.bf16.mxu0 0
    %765 = vmatpush2.bf16.msra.mxu0 0
    %766 = vmatprep.subr.bf16.mxu0 0
    %767 = vmatpush2.bf16.msra.mxu0 0
    %768 = vmatprep.subr.bf16.mxu0 0
    %769 = vmatpush2.bf16.msra.mxu0 0
    %770 = vmatprep.subr.bf16.mxu0 0
    %771 = vmatpush2.bf16.msra.mxu0 0
    %772 = vmatprep.subr.bf16.mxu0 0
    %773 = vmatpush2.bf16.msra.mxu0 0
    %774 = vmatprep.subr.bf16.mxu0 0
    %775 = vmatpush2.bf16.msra.mxu0 0
    %776 = vmatprep.subr.bf16.mxu0 0
    %777 = vmatpush2.bf16.msra.mxu0 0
    %778 = vmatprep.mubr.bf16.mxu0 0
    %779 = vmatmul.mubr.bf16.gmra.mxu0 %v328
    %v780 = vpop.f32.mrf.mxu0
    %v781 = vadd.f32 0.0, %v780
    %v782 = vpop.f32.mrf.mxu0
    %v783 = vpop.f32.mrf.mxu0
    %v784 = vadd.f32 0.0, %v783
    %v785 = vpop.f32.mrf.mxu0
    %786 = vmatprep.mubr.bf16.mxu0 0
    %787 = vmatmul.mubr.bf16.gmra.mxu0 %v329
    %v788 = vpop.f32.mrf.mxu0
    %v789 = vadd.f32 0.0, %v788
    %v790 = vpop.f32.mrf.mxu0
    %v791 = vpop.f32.mrf.mxu0
    %v792 = vpop.f32.mrf.mxu0
    %793 = vdwg.mxu0
    %v794 = vadd.f32 %v678, %v781
    %v795 = vadd.f32 %v679, %v784
    %v796 = vadd.f32 %v680, %v789
    %v797 = vlaneseq
    %v798 = vshrl.u32 %v797, 7
    %v799 = vsub.s32 0, %v798
    %v800 = vrot.slane %v57, %v799
    %v801 = vadd.f32 %v794, %v800
    %v802 = vadd.f32 %v795, %v800
    %v803 = vadd.f32 %v796, %v800
    %v804 = vmax.f32 %v801, 0.0
    %v805 = vmax.f32 %v802, 0.0
    %v806 = vmax.f32 %v803, 0.0
    %v807 = vpack.c.bf16 %v805, %v804
    %v808 = vpack.c.bf16 %v806, %v806
    %s809 = scalar_lea.vmem [#allocation2], 256
    %v810 = vld [vmem:[%s809] sm:$0xf]
    %v811 = vld [vmem:[%s809 + $0x4] sm:$0xf]
    %v812 = vld [vmem:[%s809 + $0x8] sm:$0xf]
    %v813 = vld [vmem:[%s809 + $0xc] sm:$0xf]
    %v814 = vld [vmem:[%s809 + $0x10] sm:$0xf]
    %v815 = vld [vmem:[%s809 + $0x14] sm:$0xf]
    %v816 = vld [vmem:[%s809 + $0x18] sm:$0xf]
    %v817 = vld [vmem:[%s809 + $0x1c] sm:$0xf]
    %v818 = vld [vmem:[%s809 + $0x20] sm:$0xf]
    %v819 = vld [vmem:[%s809 + $0x24] sm:$0xf]
    %v820 = vld [vmem:[%s809 + $0x28] sm:$0xf]
    %v821 = vld [vmem:[%s809 + $0x2c] sm:$0xf]
    %v822 = vld [vmem:[%s809 + $0x30] sm:$0xf]
    %v823 = vld [vmem:[%s809 + $0x34] sm:$0xf]
    %v824 = vld [vmem:[%s809 + $0x38] sm:$0xf]
    %v825 = vld [vmem:[%s809 + $0x3c] sm:$0xf]
    %v826 = vlaneseq
    %v827 = vshrl.u32 %v826, 7
    %v828 = vsub.s32 1, %v827
    %v829 = vrot.slane %v57, %v828
    %v846 = vunpack.c.l.b16 %v810
    %v847 = vunpack.c.l.b16 %v811
    %v848 = vunpack.c.l.b16 %v812
    %v849 = vunpack.c.l.b16 %v813
    %v850 = vunpack.c.l.b16 %v814
    %v851 = vunpack.c.l.b16 %v815
    %v852 = vunpack.c.l.b16 %v816
    %v853 = vunpack.c.l.b16 %v817
    %v854 = vunpack.c.l.b16 %v818
    %v855 = vunpack.c.l.b16 %v819
    %v856 = vunpack.c.l.b16 %v820
    %v857 = vunpack.c.l.b16 %v821
    %v858 = vunpack.c.l.b16 %v822
    %v859 = vunpack.c.l.b16 %v823
    %v860 = vunpack.c.l.b16 %v824
    %v861 = vunpack.c.l.b16 %v825
    %v862 = vpack.c.b16 %v847, %v846
    %v863 = vpack.c.b16 %v849, %v848
    %v864 = vpack.c.b16 %v851, %v850
    %v865 = vpack.c.b16 %v853, %v852
    %v866 = vpack.c.b16 %v855, %v854
    %v867 = vpack.c.b16 %v857, %v856
    %v868 = vpack.c.b16 %v859, %v858
    %v869 = vpack.c.b16 %v861, %v860
    %878 = vmatprep.subr.bf16.mxu0 0
    %879 = vmatpush1.bf16.msra.mxu0 %v869
    %880 = vmatprep.subr.bf16.mxu0 0
    %881 = vmatpush1.bf16.msra.mxu0 %v868
    %882 = vmatprep.subr.bf16.mxu0 0
    %883 = vmatpush1.bf16.msra.mxu0 %v867
    %884 = vmatprep.subr.bf16.mxu0 0
    %885 = vmatpush1.bf16.msra.mxu0 %v866
    %886 = vmatprep.subr.bf16.mxu0 0
    %887 = vmatpush1.bf16.msra.mxu0 %v865
    %888 = vmatprep.subr.bf16.mxu0 0
    %889 = vmatpush1.bf16.msra.mxu0 %v864
    %890 = vmatprep.subr.bf16.mxu0 0
    %891 = vmatpush1.bf16.msra.mxu0 %v863
    %892 = vmatprep.subr.bf16.mxu0 0
    %893 = vmatpush1.bf16.msra.mxu0 %v862
    %894 = vmatprep.subr.bf16.mxu0 0
    %895 = vmatpush2.bf16.msra.mxu0 0
    %896 = vmatprep.subr.bf16.mxu0 0
    %897 = vmatpush2.bf16.msra.mxu0 0
    %898 = vmatprep.subr.bf16.mxu0 0
    %899 = vmatpush2.bf16.msra.mxu0 0
    %900 = vmatprep.subr.bf16.mxu0 0
    %901 = vmatpush2.bf16.msra.mxu0 0
    %902 = vmatprep.subr.bf16.mxu0 0
    %903 = vmatpush2.bf16.msra.mxu0 0
    %904 = vmatprep.subr.bf16.mxu0 0
    %905 = vmatpush2.bf16.msra.mxu0 0
    %906 = vmatprep.subr.bf16.mxu0 0
    %907 = vmatpush2.bf16.msra.mxu0 0
    %908 = vmatprep.subr.bf16.mxu0 0
    %909 = vmatpush2.bf16.msra.mxu0 0
    %910 = vmatprep.mubr.bf16.mxu0 0
    %911 = vmatmul.mubr.bf16.gmra.mxu0 %v807
    %v912 = vpop.f32.mrf.mxu0
    %v913 = vadd.f32 %v829, %v912
    %v914 = vpop.f32.mrf.mxu0
    %v915 = vpop.f32.mrf.mxu0
    %v916 = vadd.f32 %v829, %v915
    %v917 = vpop.f32.mrf.mxu0
    %918 = vmatprep.mubr.bf16.mxu0 0
    %919 = vmatmul.mubr.bf16.gmra.mxu0 %v808
    %v920 = vpop.f32.mrf.mxu0
    %v921 = vadd.f32 %v829, %v920
    %v922 = vpop.f32.mrf.mxu0
    %v923 = vpop.f32.mrf.mxu0
    %v924 = vpop.f32.mrf.mxu0
    %925 = vdwg.mxu0
    %926 = vst [vmem:[%s7] sm:$0xff] %v913
    %927 = vst [vmem:[%s7 + $0x8] sm:$0xff] %v916
    %928 = vst [vmem:[%s7 + $0x10] sm:$0xff] %v921
    %v929 = vpack.c.bf16 %v916, %v913
    %v930 = vpack.c.bf16 %v921, %v921
    %s931 = scalar_lea.vmem [#allocation2], 320
    %v932 = vld [vmem:[%s931] sm:$0xf]
    %v933 = vld [vmem:[%s931 + $0x4] sm:$0xf]
    %v934 = vld [vmem:[%s931 + $0x8] sm:$0xf]
    %v935 = vld [vmem:[%s931 + $0xc] sm:$0xf]
    %v936 = vld [vmem:[%s931 + $0x10] sm:$0xf]
    %v937 = vld [vmem:[%s931 + $0x14] sm:$0xf]
    %v938 = vld [vmem:[%s931 + $0x18] sm:$0xf]
    %v939 = vld [vmem:[%s931 + $0x1c] sm:$0xf]
    %v940 = vld [vmem:[%s931 + $0x20] sm:$0xf]
    %v941 = vld [vmem:[%s931 + $0x24] sm:$0xf]
    %v942 = vld [vmem:[%s931 + $0x28] sm:$0xf]
    %v943 = vld [vmem:[%s931 + $0x2c] sm:$0xf]
    %v944 = vld [vmem:[%s931 + $0x30] sm:$0xf]
    %v945 = vld [vmem:[%s931 + $0x34] sm:$0xf]
    %v946 = vld [vmem:[%s931 + $0x38] sm:$0xf]
    %v947 = vld [vmem:[%s931 + $0x3c] sm:$0xf]
    %s948 = scalar_lea.vmem [#allocation2], 384
    %v949 = vld [vmem:[%s948] sm:$0xf]
    %v950 = vld [vmem:[%s948 + $0x4] sm:$0xf]
    %v951 = vld [vmem:[%s948 + $0x8] sm:$0xf]
    %v952 = vld [vmem:[%s948 + $0xc] sm:$0xf]
    %v953 = vld [vmem:[%s948 + $0x10] sm:$0xf]
    %v954 = vld [vmem:[%s948 + $0x14] sm:$0xf]
    %v955 = vld [vmem:[%s948 + $0x18] sm:$0xf]
    %v956 = vld [vmem:[%s948 + $0x1c] sm:$0xf]
    %v957 = vld [vmem:[%s948 + $0x20] sm:$0xf]
    %v958 = vld [vmem:[%s948 + $0x24] sm:$0xf]
    %v959 = vld [vmem:[%s948 + $0x28] sm:$0xf]
    %v960 = vld [vmem:[%s948 + $0x2c] sm:$0xf]
    %v961 = vld [vmem:[%s948 + $0x30] sm:$0xf]
    %v962 = vld [vmem:[%s948 + $0x34] sm:$0xf]
    %v963 = vld [vmem:[%s948 + $0x38] sm:$0xf]
    %v964 = vld [vmem:[%s948 + $0x3c] sm:$0xf]
    %v981 = vunpack.c.l.b16 %v949
    %v982 = vunpack.c.l.b16 %v950
    %v983 = vunpack.c.l.b16 %v951
    %v984 = vunpack.c.l.b16 %v952
    %v985 = vunpack.c.l.b16 %v953
    %v986 = vunpack.c.l.b16 %v954
    %v987 = vunpack.c.l.b16 %v955
    %v988 = vunpack.c.l.b16 %v956
    %v989 = vunpack.c.l.b16 %v957
    %v990 = vunpack.c.l.b16 %v958
    %v991 = vunpack.c.l.b16 %v959
    %v992 = vunpack.c.l.b16 %v960
    %v993 = vunpack.c.l.b16 %v961
    %v994 = vunpack.c.l.b16 %v962
    %v995 = vunpack.c.l.b16 %v963
    %v996 = vunpack.c.l.b16 %v964
    %v997 = vpack.c.b16 %v982, %v981
    %v998 = vpack.c.b16 %v984, %v983
    %v999 = vpack.c.b16 %v986, %v985
    %v1000 = vpack.c.b16 %v988, %v987
    %v1001 = vpack.c.b16 %v990, %v989
    %v1002 = vpack.c.b16 %v992, %v991
    %v1003 = vpack.c.b16 %v994, %v993
    %v1004 = vpack.c.b16 %v996, %v995
    %1013 = vmatprep.subr.bf16.mxu0 0
    %1014 = vmatpush1.bf16.msra.mxu0 %v1004
    %1015 = vmatprep.subr.bf16.mxu0 0
    %1016 = vmatpush1.bf16.msra.mxu0 %v1003
    %1017 = vmatprep.subr.bf16.mxu0 0
    %1018 = vmatpush1.bf16.msra.mxu0 %v1002
    %1019 = vmatprep.subr.bf16.mxu0 0
    %1020 = vmatpush1.bf16.msra.mxu0 %v1001
    %1021 = vmatprep.subr.bf16.mxu0 0
    %1022 = vmatpush1.bf16.msra.mxu0 %v1000
    %1023 = vmatprep.subr.bf16.mxu0 0
    %1024 = vmatpush1.bf16.msra.mxu0 %v999
    %1025 = vmatprep.subr.bf16.mxu0 0
    %1026 = vmatpush1.bf16.msra.mxu0 %v998
    %1027 = vmatprep.subr.bf16.mxu0 0
    %1028 = vmatpush1.bf16.msra.mxu0 %v997
    %1029 = vmatprep.subr.bf16.mxu0 0
    %1030 = vmatpush2.bf16.msra.mxu0 0
    %1031 = vmatprep.subr.bf16.mxu0 0
    %1032 = vmatpush2.bf16.msra.mxu0 0
    %1033 = vmatprep.subr.bf16.mxu0 0
    %1034 = vmatpush2.bf16.msra.mxu0 0
    %1035 = vmatprep.subr.bf16.mxu0 0
    %1036 = vmatpush2.bf16.msra.mxu0 0
    %1037 = vmatprep.subr.bf16.mxu0 0
    %1038 = vmatpush2.bf16.msra.mxu0 0
    %1039 = vmatprep.subr.bf16.mxu0 0
    %1040 = vmatpush2.bf16.msra.mxu0 0
    %1041 = vmatprep.subr.bf16.mxu0 0
    %1042 = vmatpush2.bf16.msra.mxu0 0
    %1043 = vmatprep.subr.bf16.mxu0 0
    %1044 = vmatpush2.bf16.msra.mxu0 0
    %1045 = vmatprep.mubr.bf16.mxu0 0
    %1046 = vmatmul.mubr.bf16.gmra.mxu0 %v929
    %v1047 = vpop.f32.mrf.mxu0
    %v1048 = vadd.f32 0.0, %v1047
    %v1049 = vpop.f32.mrf.mxu0
    %v1050 = vpop.f32.mrf.mxu0
    %v1051 = vadd.f32 0.0, %v1050
    %v1052 = vpop.f32.mrf.mxu0
    %1053 = vmatprep.mubr.bf16.mxu0 0
    %1054 = vmatmul.mubr.bf16.gmra.mxu0 %v930
    %v1055 = vpop.f32.mrf.mxu0
    %v1056 = vadd.f32 0.0, %v1055
    %v1057 = vpop.f32.mrf.mxu0
    %v1058 = vpop.f32.mrf.mxu0
    %v1059 = vpop.f32.mrf.mxu0
    %1060 = vdwg.mxu0
    %v1077 = vunpack.c.l.b16 %v932
    %v1078 = vunpack.c.l.b16 %v933
    %v1079 = vunpack.c.l.b16 %v934
    %v1080 = vunpack.c.l.b16 %v935
    %v1081 = vunpack.c.l.b16 %v936
    %v1082 = vunpack.c.l.b16 %v937
    %v1083 = vunpack.c.l.b16 %v938
    %v1084 = vunpack.c.l.b16 %v939
    %v1085 = vunpack.c.l.b16 %v940
    %v1086 = vunpack.c.l.b16 %v941
    %v1087 = vunpack.c.l.b16 %v942
    %v1088 = vunpack.c.l.b16 %v943
    %v1089 = vunpack.c.l.b16 %v944
    %v1090 = vunpack.c.l.b16 %v945
    %v1091 = vunpack.c.l.b16 %v946
    %v1092 = vunpack.c.l.b16 %v947
    %v1093 = vpack.c.b16 %v1078, %v1077
    %v1094 = vpack.c.b16 %v1080, %v1079
    %v1095 = vpack.c.b16 %v1082, %v1081
    %v1096 = vpack.c.b16 %v1084, %v1083
    %v1097 = vpack.c.b16 %v1086, %v1085
    %v1098 = vpack.c.b16 %v1088, %v1087
    %v1099 = vpack.c.b16 %v1090, %v1089
    %v1100 = vpack.c.b16 %v1092, %v1091
    %1109 = vmatprep.subr.bf16.mxu0 0
    %1110 = vmatpush1.bf16.msra.mxu0 %v1100
    %1111 = vmatprep.subr.bf16.mxu0 0
    %1112 = vmatpush1.bf16.msra.mxu0 %v1099
    %1113 = vmatprep.subr.bf16.mxu0 0
    %1114 = vmatpush1.bf16.msra.mxu0 %v1098
    %1115 = vmatprep.subr.bf16.mxu0 0
    %1116 = vmatpush1.bf16.msra.mxu0 %v1097
    %1117 = vmatprep.subr.bf16.mxu0 0
    %1118 = vmatpush1.bf16.msra.mxu0 %v1096
    %1119 = vmatprep.subr.bf16.mxu0 0
    %1120 = vmatpush1.bf16.msra.mxu0 %v1095
    %1121 = vmatprep.subr.bf16.mxu0 0
    %1122 = vmatpush1.bf16.msra.mxu0 %v1094
    %1123 = vmatprep.subr.bf16.mxu0 0
    %1124 = vmatpush1.bf16.msra.mxu0 %v1093
    %1125 = vmatprep.subr.bf16.mxu0 0
    %1126 = vmatpush2.bf16.msra.mxu0 0
    %1127 = vmatprep.subr.bf16.mxu0 0
    %1128 = vmatpush2.bf16.msra.mxu0 0
    %1129 = vmatprep.subr.bf16.mxu0 0
    %1130 = vmatpush2.bf16.msra.mxu0 0
    %1131 = vmatprep.subr.bf16.mxu0 0
    %1132 = vmatpush2.bf16.msra.mxu0 0
    %1133 = vmatprep.subr.bf16.mxu0 0
    %1134 = vmatpush2.bf16.msra.mxu0 0
    %1135 = vmatprep.subr.bf16.mxu0 0
    %1136 = vmatpush2.bf16.msra.mxu0 0
    %1137 = vmatprep.subr.bf16.mxu0 0
    %1138 = vmatpush2.bf16.msra.mxu0 0
    %1139 = vmatprep.subr.bf16.mxu0 0
    %1140 = vmatpush2.bf16.msra.mxu0 0
    %1141 = vmatprep.mubr.bf16.mxu0 0
    %1142 = vmatmul.mubr.bf16.gmra.mxu0 %v169
    %v1143 = vpop.f32.mrf.mxu0
    %v1144 = vadd.f32 %v1048, %v1143
    %v1145 = vpop.f32.mrf.mxu0
    %v1146 = vpop.f32.mrf.mxu0
    %v1147 = vadd.f32 %v1051, %v1146
    %v1148 = vpop.f32.mrf.mxu0
    %1149 = vmatprep.mubr.bf16.mxu0 0
    %1150 = vmatmul.mubr.bf16.gmra.mxu0 %v170
    %v1151 = vpop.f32.mrf.mxu0
    %v1152 = vadd.f32 %v1056, %v1151
    %v1153 = vpop.f32.mrf.mxu0
    %v1154 = vpop.f32.mrf.mxu0
    %v1155 = vpop.f32.mrf.mxu0
    %1156 = vdwg.mxu0
    %v1157 = vlaneseq
    %v1158 = vshrl.u32 %v1157, 7
    %v1159 = vsub.s32 2, %v1158
    %v1160 = vrot.slane %v57, %v1159
    %v1161 = vadd.f32 %v1144, %v1160
    %v1162 = vadd.f32 %v1147, %v1160
    %v1163 = vadd.f32 %v1152, %v1160
    %v1164 = vmax.f32 %v1161, 0.0
    %v1165 = vmax.f32 %v1162, 0.0
    %v1166 = vmax.f32 %v1163, 0.0
    %v1167 = vpack.c.bf16 %v1165, %v1164
    %v1168 = vpack.c.bf16 %v1166, %v1166
    %s1169 = scalar_lea.vmem [#allocation2], 448
    %v1170 = vld [vmem:[%s1169] sm:$0xf]
    %v1171 = vld [vmem:[%s1169 + $0x4] sm:$0xf]
    %v1172 = vld [vmem:[%s1169 + $0x8] sm:$0xf]
    %v1173 = vld [vmem:[%s1169 + $0xc] sm:$0xf]
    %v1174 = vld [vmem:[%s1169 + $0x10] sm:$0xf]
    %v1175 = vld [vmem:[%s1169 + $0x14] sm:$0xf]
    %v1176 = vld [vmem:[%s1169 + $0x18] sm:$0xf]
    %v1177 = vld [vmem:[%s1169 + $0x1c] sm:$0xf]
    %v1178 = vld [vmem:[%s1169 + $0x20] sm:$0xf]
    %v1179 = vld [vmem:[%s1169 + $0x24] sm:$0xf]
    %v1180 = vld [vmem:[%s1169 + $0x28] sm:$0xf]
    %v1181 = vld [vmem:[%s1169 + $0x2c] sm:$0xf]
    %v1182 = vld [vmem:[%s1169 + $0x30] sm:$0xf]
    %v1183 = vld [vmem:[%s1169 + $0x34] sm:$0xf]
    %v1184 = vld [vmem:[%s1169 + $0x38] sm:$0xf]
    %v1185 = vld [vmem:[%s1169 + $0x3c] sm:$0xf]
    %v1186 = vlaneseq
    %v1187 = vshrl.u32 %v1186, 7
    %v1188 = vsub.s32 3, %v1187
    %v1189 = vrot.slane %v57, %v1188
    %v1206 = vunpack.c.l.b16 %v1170
    %v1207 = vunpack.c.l.b16 %v1171
    %v1208 = vunpack.c.l.b16 %v1172
    %v1209 = vunpack.c.l.b16 %v1173
    %v1210 = vunpack.c.l.b16 %v1174
    %v1211 = vunpack.c.l.b16 %v1175
    %v1212 = vunpack.c.l.b16 %v1176
    %v1213 = vunpack.c.l.b16 %v1177
    %v1214 = vunpack.c.l.b16 %v1178
    %v1215 = vunpack.c.l.b16 %v1179
    %v1216 = vunpack.c.l.b16 %v1180
    %v1217 = vunpack.c.l.b16 %v1181
    %v1218 = vunpack.c.l.b16 %v1182
    %v1219 = vunpack.c.l.b16 %v1183
    %v1220 = vunpack.c.l.b16 %v1184
    %v1221 = vunpack.c.l.b16 %v1185
    %v1222 = vpack.c.b16 %v1207, %v1206
    %v1223 = vpack.c.b16 %v1209, %v1208
    %v1224 = vpack.c.b16 %v1211, %v1210
    %v1225 = vpack.c.b16 %v1213, %v1212
    %v1226 = vpack.c.b16 %v1215, %v1214
    %v1227 = vpack.c.b16 %v1217, %v1216
    %v1228 = vpack.c.b16 %v1219, %v1218
    %v1229 = vpack.c.b16 %v1221, %v1220
    %1238 = vmatprep.subr.bf16.mxu0 0
    %1239 = vmatpush1.bf16.msra.mxu0 %v1229
    %1240 = vmatprep.subr.bf16.mxu0 0
    %1241 = vmatpush1.bf16.msra.mxu0 %v1228
    %1242 = vmatprep.subr.bf16.mxu0 0
    %1243 = vmatpush1.bf16.msra.mxu0 %v1227
    %1244 = vmatprep.subr.bf16.mxu0 0
    %1245 = vmatpush1.bf16.msra.mxu0 %v1226
    %1246 = vmatprep.subr.bf16.mxu0 0
    %1247 = vmatpush1.bf16.msra.mxu0 %v1225
    %1248 = vmatprep.subr.bf16.mxu0 0
    %1249 = vmatpush1.bf16.msra.mxu0 %v1224
    %1250 = vmatprep.subr.bf16.mxu0 0
    %1251 = vmatpush1.bf16.msra.mxu0 %v1223
    %1252 = vmatprep.subr.bf16.mxu0 0
    %1253 = vmatpush1.bf16.msra.mxu0 %v1222
    %1254 = vmatprep.subr.bf16.mxu0 0
    %1255 = vmatpush2.bf16.msra.mxu0 0
    %1256 = vmatprep.subr.bf16.mxu0 0
    %1257 = vmatpush2.bf16.msra.mxu0 0
    %1258 = vmatprep.subr.bf16.mxu0 0
    %1259 = vmatpush2.bf16.msra.mxu0 0
    %1260 = vmatprep.subr.bf16.mxu0 0
    %1261 = vmatpush2.bf16.msra.mxu0 0
    %1262 = vmatprep.subr.bf16.mxu0 0
    %1263 = vmatpush2.bf16.msra.mxu0 0
    %1264 = vmatprep.subr.bf16.mxu0 0
    %1265 = vmatpush2.bf16.msra.mxu0 0
    %1266 = vmatprep.subr.bf16.mxu0 0
    %1267 = vmatpush2.bf16.msra.mxu0 0
    %1268 = vmatprep.subr.bf16.mxu0 0
    %1269 = vmatpush2.bf16.msra.mxu0 0
    %1270 = vmatprep.mubr.bf16.mxu0 0
    %1271 = vmatmul.mubr.bf16.gmra.mxu0 %v1167
    %v1272 = vpop.f32.mrf.mxu0
    %v1273 = vadd.f32 %v1189, %v1272
    %v1274 = vpop.f32.mrf.mxu0
    %v1275 = vpop.f32.mrf.mxu0
    %v1276 = vadd.f32 %v1189, %v1275
    %v1277 = vpop.f32.mrf.mxu0
    %1278 = vmatprep.mubr.bf16.mxu0 0
    %1279 = vmatmul.mubr.bf16.gmra.mxu0 %v1168
    %v1280 = vpop.f32.mrf.mxu0
    %v1281 = vadd.f32 %v1189, %v1280
    %v1282 = vpop.f32.mrf.mxu0
    %v1283 = vpop.f32.mrf.mxu0
    %v1284 = vpop.f32.mrf.mxu0
    %1285 = vdwg.mxu0
    %v1286 = vpack.c.bf16 %v1276, %v1273
    %v1287 = vpack.c.bf16 %v1281, %v1281
    %1288 = vxpose.xlu0.c.b16.start [1/8] %v92, 128
    %1289 = vxpose.xlu0.c.b16.cont [2/8] %v93, 128
    %1290 = vxpose.xlu0.c.b16.cont [3/8] 0, 128
    %1291 = vxpose.xlu0.c.b16.cont [4/8] 0, 128
    %1292 = vxpose.xlu0.c.b16.cont [5/8] 0, 128
    %1293 = vxpose.xlu0.c.b16.cont [6/8] 0, 128
    %1294 = vxpose.xlu0.c.b16.cont [7/8] 0, 128
    %1295 = vxpose.xlu0.c.b16.end [8/8] 0, 128
    %v1296 = vpop.trf.xlu0
    %v1297 = vpop.trf.xlu0
    %v1298 = vpop.trf.xlu0
    %v1299 = vpop.trf.xlu0
    %v1300 = vpop.trf.xlu0
    %v1301 = vpop.trf.xlu0
    %v1302 = vpop.trf.xlu0
    %v1303 = vpop.trf.xlu0
    %vm1304 = vcmask 195584
    %v1306 = vsel %vm1304, %v1296, 0
    %vm1308 = vcmask 1043456
    %v1310 = vsel %vm1308, %v1287, 0
    %1312 = vmatprep.subr.bf16.mxu0 0
    %1313 = vmatpush1.bf16.msra.mxu0 0
    %1314 = vmatprep.subr.bf16.mxu0 0
    %1315 = vmatpush1.bf16.msra.mxu0 0
    %1316 = vmatprep.subr.bf16.mxu0 0
    %1317 = vmatpush1.bf16.msra.mxu0 0
    %1318 = vmatprep.subr.bf16.mxu0 0
    %1319 = vmatpush1.bf16.msra.mxu0 0
    %1320 = vmatprep.subr.bf16.mxu0 0
    %1321 = vmatpush1.bf16.msra.mxu0 0
    %1322 = vmatprep.subr.bf16.mxu0 0
    %1323 = vmatpush1.bf16.msra.mxu0 0
    %1324 = vmatprep.subr.bf16.mxu0 0
    %1325 = vmatpush1.bf16.msra.mxu0 %v1310
    %1326 = vmatprep.subr.bf16.mxu0 0
    %1327 = vmatpush1.bf16.msra.mxu0 %v1286
    %1328 = vmatprep.subr.bf16.mxu0 0
    %1329 = vmatpush2.bf16.msra.mxu0 0
    %1330 = vmatprep.subr.bf16.mxu0 0
    %1331 = vmatpush2.bf16.msra.mxu0 0
    %1332 = vmatprep.subr.bf16.mxu0 0
    %1333 = vmatpush2.bf16.msra.mxu0 0
    %1334 = vmatprep.subr.bf16.mxu0 0
    %1335 = vmatpush2.bf16.msra.mxu0 0
    %1336 = vmatprep.subr.bf16.mxu0 0
    %1337 = vmatpush2.bf16.msra.mxu0 0
    %1338 = vmatprep.subr.bf16.mxu0 0
    %1339 = vmatpush2.bf16.msra.mxu0 0
    %1340 = vmatprep.subr.bf16.mxu0 0
    %1341 = vmatpush2.bf16.msra.mxu0 0
    %1342 = vmatprep.subr.bf16.mxu0 0
    %1343 = vmatpush2.bf16.msra.mxu0 0
    %1344 = vmatprep.mubr.bf16.mxu0 0
    %1345 = vmatmul.mubr.bf16.gmra.mxu0 %v1306
    %v1346 = vpop.f32.mrf.mxu0
    %v1347 = vadd.f32 0.0, %v1346
    %v1348 = vpop.f32.mrf.mxu0
    %v1349 = vpop.f32.mrf.mxu0
    %v1350 = vadd.f32 0.0, %v1349
    %v1351 = vpop.f32.mrf.mxu0
    %1352 = vdwg.mxu0
    %v1354 = vsel %vm1308, 1065369472, 0
    %1356 = vmatprep.subr.bf16.mxu0 0
    %1357 = vmatpush1.bf16.msra.mxu0 0
    %1358 = vmatprep.subr.bf16.mxu0 0
    %1359 = vmatpush1.bf16.msra.mxu0 0
    %1360 = vmatprep.subr.bf16.mxu0 0
    %1361 = vmatpush1.bf16.msra.mxu0 0
    %1362 = vmatprep.subr.bf16.mxu0 0
    %1363 = vmatpush1.bf16.msra.mxu0 0
    %1364 = vmatprep.subr.bf16.mxu0 0
    %1365 = vmatpush1.bf16.msra.mxu0 0
    %1366 = vmatprep.subr.bf16.mxu0 0
    %1367 = vmatpush1.bf16.msra.mxu0 0
    %1368 = vmatprep.subr.bf16.mxu0 0
    %1369 = vmatpush1.bf16.msra.mxu0 %v1354
    %1370 = vmatprep.subr.bf16.mxu0 0
    %1371 = vmatpush1.bf16.msra.mxu0 1065369472
    %1372 = vmatprep.subr.bf16.mxu0 0
    %1373 = vmatpush2.bf16.msra.mxu0 0
    %1374 = vmatprep.subr.bf16.mxu0 0
    %1375 = vmatpush2.bf16.msra.mxu0 0
    %1376 = vmatprep.subr.bf16.mxu0 0
    %1377 = vmatpush2.bf16.msra.mxu0 0
    %1378 = vmatprep.subr.bf16.mxu0 0
    %1379 = vmatpush2.bf16.msra.mxu0 0
    %1380 = vmatprep.subr.bf16.mxu0 0
    %1381 = vmatpush2.bf16.msra.mxu0 0
    %1382 = vmatprep.subr.bf16.mxu0 0
    %1383 = vmatpush2.bf16.msra.mxu0 0
    %1384 = vmatprep.subr.bf16.mxu0 0
    %1385 = vmatpush2.bf16.msra.mxu0 0
    %1386 = vmatprep.subr.bf16.mxu0 0
    %1387 = vmatpush2.bf16.msra.mxu0 0
    %1388 = vmatprep.mubr.bf16.mxu0 0
    %1389 = vmatmul.mubr.bf16.gmra.mxu0 %v1306
    %v1390 = vpop.f32.mrf.mxu0
    %v1391 = vadd.f32 0.0, %v1390
    %v1392 = vpop.f32.mrf.mxu0
    %v1393 = vpop.f32.mrf.mxu0
    %v1394 = vadd.f32 0.0, %v1393
    %v1395 = vpop.f32.mrf.mxu0
    %1396 = vdwg.mxu0
    %v1397 = vmax.f32 %v1391, 1.0
    %v1398 = vmax.f32 %v1394, 1.0
    %v1399 = vrcp.pop %v1397
    %v1400 = vrcp.pop %v1398
    %1402 = vset.pattern.permute.xlu0 0
    %1403 = vperm.xlu0 %1402, %v1399
    %v1404 = vpop.permute.xlu0 %1403
    %1407 = vset.pattern.permute.xlu0 0
    %1408 = vperm.xlu0 %1407, %v1400
    %v1409 = vpop.permute.xlu0 %1408
    %v1411 = vmul.f32 %v1347, %v1404
    %v1412 = vmul.f32 %v1350, %v1409
    %v1413 = vpack.c.bf16 %v1412, %v1411
    %s1414 = scalar_lea.vmem [#allocation2], 512
    %v1415 = vld [vmem:[%s1414] sm:$0xf]
    %v1416 = vld [vmem:[%s1414 + $0x4] sm:$0xf]
    %v1417 = vld [vmem:[%s1414 + $0x8] sm:$0xf]
    %v1418 = vld [vmem:[%s1414 + $0xc] sm:$0xf]
    %v1419 = vld [vmem:[%s1414 + $0x10] sm:$0xf]
    %v1420 = vld [vmem:[%s1414 + $0x14] sm:$0xf]
    %v1421 = vld [vmem:[%s1414 + $0x18] sm:$0xf]
    %v1422 = vld [vmem:[%s1414 + $0x1c] sm:$0xf]
    %v1423 = vld [vmem:[%s1414 + $0x20] sm:$0xf]
    %v1424 = vld [vmem:[%s1414 + $0x24] sm:$0xf]
    %v1425 = vld [vmem:[%s1414 + $0x28] sm:$0xf]
    %v1426 = vld [vmem:[%s1414 + $0x2c] sm:$0xf]
    %v1427 = vld [vmem:[%s1414 + $0x30] sm:$0xf]
    %v1428 = vld [vmem:[%s1414 + $0x34] sm:$0xf]
    %v1429 = vld [vmem:[%s1414 + $0x38] sm:$0xf]
    %v1430 = vld [vmem:[%s1414 + $0x3c] sm:$0xf]
    %s1431 = scalar_lea.vmem [#allocation2], 576
    %v1432 = vld [vmem:[%s1431] sm:$0xf]
    %v1433 = vld [vmem:[%s1431 + $0x4] sm:$0xf]
    %v1434 = vld [vmem:[%s1431 + $0x8] sm:$0xf]
    %v1435 = vld [vmem:[%s1431 + $0xc] sm:$0xf]
    %v1436 = vld [vmem:[%s1431 + $0x10] sm:$0xf]
    %v1437 = vld [vmem:[%s1431 + $0x14] sm:$0xf]
    %v1438 = vld [vmem:[%s1431 + $0x18] sm:$0xf]
    %v1439 = vld [vmem:[%s1431 + $0x1c] sm:$0xf]
    %v1440 = vld [vmem:[%s1431 + $0x20] sm:$0xf]
    %v1441 = vld [vmem:[%s1431 + $0x24] sm:$0xf]
    %v1442 = vld [vmem:[%s1431 + $0x28] sm:$0xf]
    %v1443 = vld [vmem:[%s1431 + $0x2c] sm:$0xf]
    %v1444 = vld [vmem:[%s1431 + $0x30] sm:$0xf]
    %v1445 = vld [vmem:[%s1431 + $0x34] sm:$0xf]
    %v1446 = vld [vmem:[%s1431 + $0x38] sm:$0xf]
    %v1447 = vld [vmem:[%s1431 + $0x3c] sm:$0xf]
    %v1464 = vunpack.c.l.b16 %v1432
    %v1465 = vunpack.c.l.b16 %v1433
    %v1466 = vunpack.c.l.b16 %v1434
    %v1467 = vunpack.c.l.b16 %v1435
    %v1468 = vunpack.c.l.b16 %v1436
    %v1469 = vunpack.c.l.b16 %v1437
    %v1470 = vunpack.c.l.b16 %v1438
    %v1471 = vunpack.c.l.b16 %v1439
    %v1472 = vunpack.c.l.b16 %v1440
    %v1473 = vunpack.c.l.b16 %v1441
    %v1474 = vunpack.c.l.b16 %v1442
    %v1475 = vunpack.c.l.b16 %v1443
    %v1476 = vunpack.c.l.b16 %v1444
    %v1477 = vunpack.c.l.b16 %v1445
    %v1478 = vunpack.c.l.b16 %v1446
    %v1479 = vunpack.c.l.b16 %v1447
    %v1480 = vpack.c.b16 %v1465, %v1464
    %v1481 = vpack.c.b16 %v1467, %v1466
    %v1482 = vpack.c.b16 %v1469, %v1468
    %v1483 = vpack.c.b16 %v1471, %v1470
    %v1484 = vpack.c.b16 %v1473, %v1472
    %v1485 = vpack.c.b16 %v1475, %v1474
    %v1486 = vpack.c.b16 %v1477, %v1476
    %v1487 = vpack.c.b16 %v1479, %v1478
    %1496 = vmatprep.subr.bf16.mxu0 0
    %1497 = vmatpush1.bf16.msra.mxu0 %v1487
    %1498 = vmatprep.subr.bf16.mxu0 0
    %1499 = vmatpush1.bf16.msra.mxu0 %v1486
    %1500 = vmatprep.subr.bf16.mxu0 0
    %1501 = vmatpush1.bf16.msra.mxu0 %v1485
    %1502 = vmatprep.subr.bf16.mxu0 0
    %1503 = vmatpush1.bf16.msra.mxu0 %v1484
    %1504 = vmatprep.subr.bf16.mxu0 0
    %1505 = vmatpush1.bf16.msra.mxu0 %v1483
    %1506 = vmatprep.subr.bf16.mxu0 0
    %1507 = vmatpush1.bf16.msra.mxu0 %v1482
    %1508 = vmatprep.subr.bf16.mxu0 0
    %1509 = vmatpush1.bf16.msra.mxu0 %v1481
    %1510 = vmatprep.subr.bf16.mxu0 0
    %1511 = vmatpush1.bf16.msra.mxu0 %v1480
    %1512 = vmatprep.subr.bf16.mxu0 0
    %1513 = vmatpush2.bf16.msra.mxu0 0
    %1514 = vmatprep.subr.bf16.mxu0 0
    %1515 = vmatpush2.bf16.msra.mxu0 0
    %1516 = vmatprep.subr.bf16.mxu0 0
    %1517 = vmatpush2.bf16.msra.mxu0 0
    %1518 = vmatprep.subr.bf16.mxu0 0
    %1519 = vmatpush2.bf16.msra.mxu0 0
    %1520 = vmatprep.subr.bf16.mxu0 0
    %1521 = vmatpush2.bf16.msra.mxu0 0
    %1522 = vmatprep.subr.bf16.mxu0 0
    %1523 = vmatpush2.bf16.msra.mxu0 0
    %1524 = vmatprep.subr.bf16.mxu0 0
    %1525 = vmatpush2.bf16.msra.mxu0 0
    %1526 = vmatprep.subr.bf16.mxu0 0
    %1527 = vmatpush2.bf16.msra.mxu0 0
    %1528 = vmatprep.mubr.bf16.mxu0 0
    %1529 = vmatmul.mubr.bf16.gmra.mxu0 %v1413
    %v1530 = vpop.f32.mrf.mxu0
    %v1531 = vadd.f32 0.0, %v1530
    %v1532 = vpop.f32.mrf.mxu0
    %v1533 = vpop.f32.mrf.mxu0
    %v1534 = vadd.f32 0.0, %v1533
    %v1535 = vpop.f32.mrf.mxu0
    %1536 = vdwg.mxu0
    %v1554 = vunpack.c.l.b16 %v1415
    %v1555 = vunpack.c.l.b16 %v1416
    %v1556 = vunpack.c.l.b16 %v1417
    %v1557 = vunpack.c.l.b16 %v1418
    %v1558 = vunpack.c.l.b16 %v1419
    %v1559 = vunpack.c.l.b16 %v1420
    %v1560 = vunpack.c.l.b16 %v1421
    %v1561 = vunpack.c.l.b16 %v1422
    %v1562 = vunpack.c.l.b16 %v1423
    %v1563 = vunpack.c.l.b16 %v1424
    %v1564 = vunpack.c.l.b16 %v1425
    %v1565 = vunpack.c.l.b16 %v1426
    %v1566 = vunpack.c.l.b16 %v1427
    %v1567 = vunpack.c.l.b16 %v1428
    %v1568 = vunpack.c.l.b16 %v1429
    %v1569 = vunpack.c.l.b16 %v1430
    %v1570 = vpack.c.b16 %v1555, %v1554
    %v1571 = vpack.c.b16 %v1557, %v1556
    %v1572 = vpack.c.b16 %v1559, %v1558
    %v1573 = vpack.c.b16 %v1561, %v1560
    %v1574 = vpack.c.b16 %v1563, %v1562
    %v1575 = vpack.c.b16 %v1565, %v1564
    %v1576 = vpack.c.b16 %v1567, %v1566
    %v1577 = vpack.c.b16 %v1569, %v1568
    %1586 = vmatprep.subr.bf16.mxu0 0
    %1587 = vmatpush1.bf16.msra.mxu0 %v1577
    %1588 = vmatprep.subr.bf16.mxu0 0
    %1589 = vmatpush1.bf16.msra.mxu0 %v1576
    %1590 = vmatprep.subr.bf16.mxu0 0
    %1591 = vmatpush1.bf16.msra.mxu0 %v1575
    %1592 = vmatprep.subr.bf16.mxu0 0
    %1593 = vmatpush1.bf16.msra.mxu0 %v1574
    %1594 = vmatprep.subr.bf16.mxu0 0
    %1595 = vmatpush1.bf16.msra.mxu0 %v1573
    %1596 = vmatprep.subr.bf16.mxu0 0
    %1597 = vmatpush1.bf16.msra.mxu0 %v1572
    %1598 = vmatprep.subr.bf16.mxu0 0
    %1599 = vmatpush1.bf16.msra.mxu0 %v1571
    %1600 = vmatprep.subr.bf16.mxu0 0
    %1601 = vmatpush1.bf16.msra.mxu0 %v1570
    %1602 = vmatprep.subr.bf16.mxu0 0
    %1603 = vmatpush2.bf16.msra.mxu0 0
    %1604 = vmatprep.subr.bf16.mxu0 0
    %1605 = vmatpush2.bf16.msra.mxu0 0
    %1606 = vmatprep.subr.bf16.mxu0 0
    %1607 = vmatpush2.bf16.msra.mxu0 0
    %1608 = vmatprep.subr.bf16.mxu0 0
    %1609 = vmatpush2.bf16.msra.mxu0 0
    %1610 = vmatprep.subr.bf16.mxu0 0
    %1611 = vmatpush2.bf16.msra.mxu0 0
    %1612 = vmatprep.subr.bf16.mxu0 0
    %1613 = vmatpush2.bf16.msra.mxu0 0
    %1614 = vmatprep.subr.bf16.mxu0 0
    %1615 = vmatpush2.bf16.msra.mxu0 0
    %1616 = vmatprep.subr.bf16.mxu0 0
    %1617 = vmatpush2.bf16.msra.mxu0 0
    %1618 = vmatprep.mubr.bf16.mxu0 0
    %1619 = vmatmul.mubr.bf16.gmra.mxu0 %v109
    %v1620 = vpop.f32.mrf.mxu0
    %v1621 = vadd.f32 %v1531, %v1620
    %v1622 = vpop.f32.mrf.mxu0
    %v1623 = vpop.f32.mrf.mxu0
    %v1624 = vadd.f32 %v1534, %v1623
    %v1625 = vpop.f32.mrf.mxu0
    %1626 = vdwg.mxu0
    %s1627 = scalar_lea.vmem [#allocation2], 640
    %v1628 = vld [vmem:[%s1627] sm:$0xf]
    %v1629 = vld [vmem:[%s1627 + $0x4] sm:$0xf]
    %v1630 = vld [vmem:[%s1627 + $0x8] sm:$0xf]
    %v1631 = vld [vmem:[%s1627 + $0xc] sm:$0xf]
    %v1632 = vld [vmem:[%s1627 + $0x10] sm:$0xf]
    %v1633 = vld [vmem:[%s1627 + $0x14] sm:$0xf]
    %v1634 = vld [vmem:[%s1627 + $0x18] sm:$0xf]
    %v1635 = vld [vmem:[%s1627 + $0x1c] sm:$0xf]
    %v1636 = vld [vmem:[%s1627 + $0x20] sm:$0xf]
    %v1637 = vld [vmem:[%s1627 + $0x24] sm:$0xf]
    %v1638 = vld [vmem:[%s1627 + $0x28] sm:$0xf]
    %v1639 = vld [vmem:[%s1627 + $0x2c] sm:$0xf]
    %v1640 = vld [vmem:[%s1627 + $0x30] sm:$0xf]
    %v1641 = vld [vmem:[%s1627 + $0x34] sm:$0xf]
    %v1642 = vld [vmem:[%s1627 + $0x38] sm:$0xf]
    %v1643 = vld [vmem:[%s1627 + $0x3c] sm:$0xf]
    %v1660 = vunpack.c.l.b16 %v1628
    %v1661 = vunpack.c.l.b16 %v1629
    %v1662 = vunpack.c.l.b16 %v1630
    %v1663 = vunpack.c.l.b16 %v1631
    %v1664 = vunpack.c.l.b16 %v1632
    %v1665 = vunpack.c.l.b16 %v1633
    %v1666 = vunpack.c.l.b16 %v1634
    %v1667 = vunpack.c.l.b16 %v1635
    %v1668 = vunpack.c.l.b16 %v1636
    %v1669 = vunpack.c.l.b16 %v1637
    %v1670 = vunpack.c.l.b16 %v1638
    %v1671 = vunpack.c.l.b16 %v1639
    %v1672 = vunpack.c.l.b16 %v1640
    %v1673 = vunpack.c.l.b16 %v1641
    %v1674 = vunpack.c.l.b16 %v1642
    %v1675 = vunpack.c.l.b16 %v1643
    %v1676 = vpack.c.b16 %v1661, %v1660
    %v1677 = vpack.c.b16 %v1663, %v1662
    %v1678 = vpack.c.b16 %v1665, %v1664
    %v1679 = vpack.c.b16 %v1667, %v1666
    %v1680 = vpack.c.b16 %v1669, %v1668
    %v1681 = vpack.c.b16 %v1671, %v1670
    %v1682 = vpack.c.b16 %v1673, %v1672
    %v1683 = vpack.c.b16 %v1675, %v1674
    %1692 = vmatprep.subr.bf16.mxu0 0
    %1693 = vmatpush1.bf16.msra.mxu0 %v1683
    %1694 = vmatprep.subr.bf16.mxu0 0
    %1695 = vmatpush1.bf16.msra.mxu0 %v1682
    %1696 = vmatprep.subr.bf16.mxu0 0
    %1697 = vmatpush1.bf16.msra.mxu0 %v1681
    %1698 = vmatprep.subr.bf16.mxu0 0
    %1699 = vmatpush1.bf16.msra.mxu0 %v1680
    %1700 = vmatprep.subr.bf16.mxu0 0
    %1701 = vmatpush1.bf16.msra.mxu0 %v1679
    %1702 = vmatprep.subr.bf16.mxu0 0
    %1703 = vmatpush1.bf16.msra.mxu0 %v1678
    %1704 = vmatprep.subr.bf16.mxu0 0
    %1705 = vmatpush1.bf16.msra.mxu0 %v1677
    %1706 = vmatprep.subr.bf16.mxu0 0
    %1707 = vmatpush1.bf16.msra.mxu0 %v1676
    %1708 = vmatprep.subr.bf16.mxu0 0
    %1709 = vmatpush2.bf16.msra.mxu0 0
    %1710 = vmatprep.subr.bf16.mxu0 0
    %1711 = vmatpush2.bf16.msra.mxu0 0
    %1712 = vmatprep.subr.bf16.mxu0 0
    %1713 = vmatpush2.bf16.msra.mxu0 0
    %1714 = vmatprep.subr.bf16.mxu0 0
    %1715 = vmatpush2.bf16.msra.mxu0 0
    %1716 = vmatprep.subr.bf16.mxu0 0
    %1717 = vmatpush2.bf16.msra.mxu0 0
    %1718 = vmatprep.subr.bf16.mxu0 0
    %1719 = vmatpush2.bf16.msra.mxu0 0
    %1720 = vmatprep.subr.bf16.mxu0 0
    %1721 = vmatpush2.bf16.msra.mxu0 0
    %1722 = vmatprep.subr.bf16.mxu0 0
    %1723 = vmatpush2.bf16.msra.mxu0 0
    %1724 = vmatprep.mubr.bf16.mxu0 0
    %1725 = vmatmul.mubr.bf16.gmra.mxu0 %v276
    %v1726 = vpop.f32.mrf.mxu0
    %v1727 = vadd.f32 0.0, %v1726
    %v1728 = vpop.f32.mrf.mxu0
    %v1729 = vpop.f32.mrf.mxu0
    %v1730 = vadd.f32 0.0, %v1729
    %v1731 = vpop.f32.mrf.mxu0
    %1732 = vdwg.mxu0
    %v1733 = vadd.f32 %v1621, %v1727
    %v1734 = vadd.f32 %v1624, %v1730
    %v1735 = vlaneseq
    %v1736 = vshrl.u32 %v1735, 7
    %v1737 = vsub.s32 4, %v1736
    %v1738 = vrot.slane %v57, %v1737
    %v1739 = vadd.f32 %v1733, %v1738
    %v1740 = vadd.f32 %v1734, %v1738
    %v1741 = vmax.f32 %v1739, 0.0
    %v1742 = vmax.f32 %v1740, 0.0
    %v1743 = vpack.c.bf16 %v1742, %v1741
    %s1744 = scalar_lea.vmem [#allocation2], 704
    %v1745 = vld [vmem:[%s1744] sm:$0xf]
    %v1746 = vld [vmem:[%s1744 + $0x4] sm:$0xf]
    %v1747 = vld [vmem:[%s1744 + $0x8] sm:$0xf]
    %v1748 = vld [vmem:[%s1744 + $0xc] sm:$0xf]
    %v1749 = vld [vmem:[%s1744 + $0x10] sm:$0xf]
    %v1750 = vld [vmem:[%s1744 + $0x14] sm:$0xf]
    %v1751 = vld [vmem:[%s1744 + $0x18] sm:$0xf]
    %v1752 = vld [vmem:[%s1744 + $0x1c] sm:$0xf]
    %v1753 = vld [vmem:[%s1744 + $0x20] sm:$0xf]
    %v1754 = vld [vmem:[%s1744 + $0x24] sm:$0xf]
    %v1755 = vld [vmem:[%s1744 + $0x28] sm:$0xf]
    %v1756 = vld [vmem:[%s1744 + $0x2c] sm:$0xf]
    %v1757 = vld [vmem:[%s1744 + $0x30] sm:$0xf]
    %v1758 = vld [vmem:[%s1744 + $0x34] sm:$0xf]
    %v1759 = vld [vmem:[%s1744 + $0x38] sm:$0xf]
    %v1760 = vld [vmem:[%s1744 + $0x3c] sm:$0xf]
    %v1761 = vlaneseq
    %v1762 = vshrl.u32 %v1761, 7
    %v1763 = vsub.s32 5, %v1762
    %v1764 = vrot.slane %v57, %v1763
    %v1781 = vunpack.c.l.b16 %v1745
    %v1782 = vunpack.c.l.b16 %v1746
    %v1783 = vunpack.c.l.b16 %v1747
    %v1784 = vunpack.c.l.b16 %v1748
    %v1785 = vunpack.c.l.b16 %v1749
    %v1786 = vunpack.c.l.b16 %v1750
    %v1787 = vunpack.c.l.b16 %v1751
    %v1788 = vunpack.c.l.b16 %v1752
    %v1789 = vunpack.c.l.b16 %v1753
    %v1790 = vunpack.c.l.b16 %v1754
    %v1791 = vunpack.c.l.b16 %v1755
    %v1792 = vunpack.c.l.b16 %v1756
    %v1793 = vunpack.c.l.b16 %v1757
    %v1794 = vunpack.c.l.b16 %v1758
    %v1795 = vunpack.c.l.b16 %v1759
    %v1796 = vunpack.c.l.b16 %v1760
    %v1797 = vpack.c.b16 %v1782, %v1781
    %v1798 = vpack.c.b16 %v1784, %v1783
    %v1799 = vpack.c.b16 %v1786, %v1785
    %v1800 = vpack.c.b16 %v1788, %v1787
    %v1801 = vpack.c.b16 %v1790, %v1789
    %v1802 = vpack.c.b16 %v1792, %v1791
    %v1803 = vpack.c.b16 %v1794, %v1793
    %v1804 = vpack.c.b16 %v1796, %v1795
    %1813 = vmatprep.subr.bf16.mxu0 0
    %1814 = vmatpush1.bf16.msra.mxu0 %v1804
    %1815 = vmatprep.subr.bf16.mxu0 0
    %1816 = vmatpush1.bf16.msra.mxu0 %v1803
    %1817 = vmatprep.subr.bf16.mxu0 0
    %1818 = vmatpush1.bf16.msra.mxu0 %v1802
    %1819 = vmatprep.subr.bf16.mxu0 0
    %1820 = vmatpush1.bf16.msra.mxu0 %v1801
    %1821 = vmatprep.subr.bf16.mxu0 0
    %1822 = vmatpush1.bf16.msra.mxu0 %v1800
    %1823 = vmatprep.subr.bf16.mxu0 0
    %1824 = vmatpush1.bf16.msra.mxu0 %v1799
    %1825 = vmatprep.subr.bf16.mxu0 0
    %1826 = vmatpush1.bf16.msra.mxu0 %v1798
    %1827 = vmatprep.subr.bf16.mxu0 0
    %1828 = vmatpush1.bf16.msra.mxu0 %v1797
    %1829 = vmatprep.subr.bf16.mxu0 0
    %1830 = vmatpush2.bf16.msra.mxu0 0
    %1831 = vmatprep.subr.bf16.mxu0 0
    %1832 = vmatpush2.bf16.msra.mxu0 0
    %1833 = vmatprep.subr.bf16.mxu0 0
    %1834 = vmatpush2.bf16.msra.mxu0 0
    %1835 = vmatprep.subr.bf16.mxu0 0
    %1836 = vmatpush2.bf16.msra.mxu0 0
    %1837 = vmatprep.subr.bf16.mxu0 0
    %1838 = vmatpush2.bf16.msra.mxu0 0
    %1839 = vmatprep.subr.bf16.mxu0 0
    %1840 = vmatpush2.bf16.msra.mxu0 0
    %1841 = vmatprep.subr.bf16.mxu0 0
    %1842 = vmatpush2.bf16.msra.mxu0 0
    %1843 = vmatprep.subr.bf16.mxu0 0
    %1844 = vmatpush2.bf16.msra.mxu0 0
    %1845 = vmatprep.mubr.bf16.mxu0 0
    %1846 = vmatmul.mubr.bf16.gmra.mxu0 %v1743
    %v1847 = vpop.f32.mrf.mxu0
    %v1848 = vadd.f32 %v1764, %v1847
    %v1849 = vpop.f32.mrf.mxu0
    %v1850 = vpop.f32.mrf.mxu0
    %v1851 = vadd.f32 %v1764, %v1850
    %v1852 = vpop.f32.mrf.mxu0
    %1853 = vdwg.mxu0
    %1854 = vst [vmem:[%s6] sm:$0xff] %v1848
    %1855 = vst [vmem:[%s6 + $0x8] sm:$0xf] %v1851
    %v1856 = vpack.c.bf16 %v1851, %v1848
    %1857 = vxpose.xlu0.c.b16.start [1/8] %v104, 128
    %1858 = vxpose.xlu0.c.b16.cont [2/8] 0, 128
    %1859 = vxpose.xlu0.c.b16.cont [3/8] 0, 128
    %1860 = vxpose.xlu0.c.b16.cont [4/8] 0, 128
    %1861 = vxpose.xlu0.c.b16.cont [5/8] 0, 128
    %1862 = vxpose.xlu0.c.b16.cont [6/8] 0, 128
    %1863 = vxpose.xlu0.c.b16.cont [7/8] 0, 128
    %1864 = vxpose.xlu0.c.b16.end [8/8] 0, 128
    %v1865 = vpop.trf.xlu0
    %v1866 = vpop.trf.xlu0
    %v1867 = vpop.trf.xlu0
    %v1868 = vpop.trf.xlu0
    %v1869 = vpop.trf.xlu0
    %v1870 = vpop.trf.xlu0
    %v1871 = vpop.trf.xlu0
    %v1872 = vpop.trf.xlu0
    %v1874 = vsel %vm110, %v1865, 0
    %v1877 = vsel %vm117, %v1856, 0
    %1879 = vmatprep.subr.bf16.mxu0 0
    %1880 = vmatpush1.bf16.msra.mxu0 0
    %1881 = vmatprep.subr.bf16.mxu0 0
    %1882 = vmatpush1.bf16.msra.mxu0 0
    %1883 = vmatprep.subr.bf16.mxu0 0
    %1884 = vmatpush1.bf16.msra.mxu0 0
    %1885 = vmatprep.subr.bf16.mxu0 0
    %1886 = vmatpush1.bf16.msra.mxu0 0
    %1887 = vmatprep.subr.bf16.mxu0 0
    %1888 = vmatpush1.bf16.msra.mxu0 0
    %1889 = vmatprep.subr.bf16.mxu0 0
    %1890 = vmatpush1.bf16.msra.mxu0 0
    %1891 = vmatprep.subr.bf16.mxu0 0
    %1892 = vmatpush1.bf16.msra.mxu0 0
    %1893 = vmatprep.subr.bf16.mxu0 0
    %1894 = vmatpush1.bf16.msra.mxu0 %v1877
    %1895 = vmatprep.subr.bf16.mxu0 0
    %1896 = vmatpush2.bf16.msra.mxu0 0
    %1897 = vmatprep.subr.bf16.mxu0 0
    %1898 = vmatpush2.bf16.msra.mxu0 0
    %1899 = vmatprep.subr.bf16.mxu0 0
    %1900 = vmatpush2.bf16.msra.mxu0 0
    %1901 = vmatprep.subr.bf16.mxu0 0
    %1902 = vmatpush2.bf16.msra.mxu0 0
    %1903 = vmatprep.subr.bf16.mxu0 0
    %1904 = vmatpush2.bf16.msra.mxu0 0
    %1905 = vmatprep.subr.bf16.mxu0 0
    %1906 = vmatpush2.bf16.msra.mxu0 0
    %1907 = vmatprep.subr.bf16.mxu0 0
    %1908 = vmatpush2.bf16.msra.mxu0 0
    %1909 = vmatprep.subr.bf16.mxu0 0
    %1910 = vmatpush2.bf16.msra.mxu0 0
    %1911 = vmatprep.mubr.bf16.mxu0 0
    %1912 = vmatmul.mubr.bf16.gmra.mxu0 %v1874
    %v1913 = vpop.f32.mrf.mxu0
    %v1914 = vadd.f32 0.0, %v1913
    %v1915 = vpop.f32.mrf.mxu0
    %v1916 = vpop.f32.mrf.mxu0
    %v1917 = vpop.f32.mrf.mxu0
    %1918 = vdwg.mxu0
    %v1919 = vsel %vm117, 1065369472, 0
    %1921 = vmatprep.subr.bf16.mxu0 0
    %1922 = vmatpush1.bf16.msra.mxu0 0
    %1923 = vmatprep.subr.bf16.mxu0 0
    %1924 = vmatpush1.bf16.msra.mxu0 0
    %1925 = vmatprep.subr.bf16.mxu0 0
    %1926 = vmatpush1.bf16.msra.mxu0 0
    %1927 = vmatprep.subr.bf16.mxu0 0
    %1928 = vmatpush1.bf16.msra.mxu0 0
    %1929 = vmatprep.subr.bf16.mxu0 0
    %1930 = vmatpush1.bf16.msra.mxu0 0
    %1931 = vmatprep.subr.bf16.mxu0 0
    %1932 = vmatpush1.bf16.msra.mxu0 0
    %1933 = vmatprep.subr.bf16.mxu0 0
    %1934 = vmatpush1.bf16.msra.mxu0 0
    %1935 = vmatprep.subr.bf16.mxu0 0
    %1936 = vmatpush1.bf16.msra.mxu0 %v1919
    %1937 = vmatprep.subr.bf16.mxu0 0
    %1938 = vmatpush2.bf16.msra.mxu0 0
    %1939 = vmatprep.subr.bf16.mxu0 0
    %1940 = vmatpush2.bf16.msra.mxu0 0
    %1941 = vmatprep.subr.bf16.mxu0 0
    %1942 = vmatpush2.bf16.msra.mxu0 0
    %1943 = vmatprep.subr.bf16.mxu0 0
    %1944 = vmatpush2.bf16.msra.mxu0 0
    %1945 = vmatprep.subr.bf16.mxu0 0
    %1946 = vmatpush2.bf16.msra.mxu0 0
    %1947 = vmatprep.subr.bf16.mxu0 0
    %1948 = vmatpush2.bf16.msra.mxu0 0
    %1949 = vmatprep.subr.bf16.mxu0 0
    %1950 = vmatpush2.bf16.msra.mxu0 0
    %1951 = vmatprep.subr.bf16.mxu0 0
    %1952 = vmatpush2.bf16.msra.mxu0 0
    %1953 = vmatprep.mubr.bf16.mxu0 0
    %1954 = vmatmul.mubr.bf16.gmra.mxu0 %v1874
    %v1955 = vpop.f32.mrf.mxu0
    %v1956 = vadd.f32 0.0, %v1955
    %v1957 = vpop.f32.mrf.mxu0
    %v1958 = vpop.f32.mrf.mxu0
    %v1959 = vpop.f32.mrf.mxu0
    %1960 = vdwg.mxu0
    %v1961 = vmax.f32 %v1956, 1.0
    %v1962 = vrcp.pop %v1961
    %1964 = vset.pattern.permute.xlu0 0
    %1965 = vperm.xlu0 %1964, %v1962
    %v1966 = vpop.permute.xlu0 %1965
    %v1968 = vmul.f32 %v1914, %v1966
    %v1969 = vpack.c.bf16 %v1968, %v1968
    %s1970 = scalar_lea.vmem [#allocation2], 768
    %v1971 = vld [vmem:[%s1970] sm:$0xf]
    %v1972 = vld [vmem:[%s1970 + $0x4] sm:$0xf]
    %v1973 = vld [vmem:[%s1970 + $0x8] sm:$0xf]
    %v1974 = vld [vmem:[%s1970 + $0xc] sm:$0xf]
    %v1975 = vld [vmem:[%s1970 + $0x10] sm:$0xf]
    %v1976 = vld [vmem:[%s1970 + $0x14] sm:$0xf]
    %v1977 = vld [vmem:[%s1970 + $0x18] sm:$0xf]
    %v1978 = vld [vmem:[%s1970 + $0x1c] sm:$0xf]
    %v1979 = vld [vmem:[%s1970 + $0x20] sm:$0xf]
    %v1980 = vld [vmem:[%s1970 + $0x24] sm:$0xf]
    %v1981 = vld [vmem:[%s1970 + $0x28] sm:$0xf]
    %v1982 = vld [vmem:[%s1970 + $0x2c] sm:$0xf]
    %v1983 = vld [vmem:[%s1970 + $0x30] sm:$0xf]
    %v1984 = vld [vmem:[%s1970 + $0x34] sm:$0xf]
    %v1985 = vld [vmem:[%s1970 + $0x38] sm:$0xf]
    %v1986 = vld [vmem:[%s1970 + $0x3c] sm:$0xf]
    %s1987 = scalar_lea.vmem [#allocation2], 832
    %v1988 = vld [vmem:[%s1987] sm:$0xf]
    %v1989 = vld [vmem:[%s1987 + $0x4] sm:$0xf]
    %v1990 = vld [vmem:[%s1987 + $0x8] sm:$0xf]
    %v1991 = vld [vmem:[%s1987 + $0xc] sm:$0xf]
    %v1992 = vld [vmem:[%s1987 + $0x10] sm:$0xf]
    %v1993 = vld [vmem:[%s1987 + $0x14] sm:$0xf]
    %v1994 = vld [vmem:[%s1987 + $0x18] sm:$0xf]
    %v1995 = vld [vmem:[%s1987 + $0x1c] sm:$0xf]
    %v1996 = vld [vmem:[%s1987 + $0x20] sm:$0xf]
    %v1997 = vld [vmem:[%s1987 + $0x24] sm:$0xf]
    %v1998 = vld [vmem:[%s1987 + $0x28] sm:$0xf]
    %v1999 = vld [vmem:[%s1987 + $0x2c] sm:$0xf]
    %v2000 = vld [vmem:[%s1987 + $0x30] sm:$0xf]
    %v2001 = vld [vmem:[%s1987 + $0x34] sm:$0xf]
    %v2002 = vld [vmem:[%s1987 + $0x38] sm:$0xf]
    %v2003 = vld [vmem:[%s1987 + $0x3c] sm:$0xf]
    %v2020 = vunpack.c.l.b16 %v1988
    %v2021 = vunpack.c.l.b16 %v1989
    %v2022 = vunpack.c.l.b16 %v1990
    %v2023 = vunpack.c.l.b16 %v1991
    %v2024 = vunpack.c.l.b16 %v1992
    %v2025 = vunpack.c.l.b16 %v1993
    %v2026 = vunpack.c.l.b16 %v1994
    %v2027 = vunpack.c.l.b16 %v1995
    %v2028 = vunpack.c.l.b16 %v1996
    %v2029 = vunpack.c.l.b16 %v1997
    %v2030 = vunpack.c.l.b16 %v1998
    %v2031 = vunpack.c.l.b16 %v1999
    %v2032 = vunpack.c.l.b16 %v2000
    %v2033 = vunpack.c.l.b16 %v2001
    %v2034 = vunpack.c.l.b16 %v2002
    %v2035 = vunpack.c.l.b16 %v2003
    %v2036 = vpack.c.b16 %v2021, %v2020
    %v2037 = vpack.c.b16 %v2023, %v2022
    %v2038 = vpack.c.b16 %v2025, %v2024
    %v2039 = vpack.c.b16 %v2027, %v2026
    %v2040 = vpack.c.b16 %v2029, %v2028
    %v2041 = vpack.c.b16 %v2031, %v2030
    %v2042 = vpack.c.b16 %v2033, %v2032
    %v2043 = vpack.c.b16 %v2035, %v2034
    %2052 = vmatprep.subr.bf16.mxu0 0
    %2053 = vmatpush1.bf16.msra.mxu0 %v2043
    %2054 = vmatprep.subr.bf16.mxu0 0
    %2055 = vmatpush1.bf16.msra.mxu0 %v2042
    %2056 = vmatprep.subr.bf16.mxu0 0
    %2057 = vmatpush1.bf16.msra.mxu0 %v2041
    %2058 = vmatprep.subr.bf16.mxu0 0
    %2059 = vmatpush1.bf16.msra.mxu0 %v2040
    %2060 = vmatprep.subr.bf16.mxu0 0
    %2061 = vmatpush1.bf16.msra.mxu0 %v2039
    %2062 = vmatprep.subr.bf16.mxu0 0
    %2063 = vmatpush1.bf16.msra.mxu0 %v2038
    %2064 = vmatprep.subr.bf16.mxu0 0
    %2065 = vmatpush1.bf16.msra.mxu0 %v2037
    %2066 = vmatprep.subr.bf16.mxu0 0
    %2067 = vmatpush1.bf16.msra.mxu0 %v2036
    %2068 = vmatprep.subr.bf16.mxu0 0
    %2069 = vmatpush2.bf16.msra.mxu0 0
    %2070 = vmatprep.subr.bf16.mxu0 0
    %2071 = vmatpush2.bf16.msra.mxu0 0
    %2072 = vmatprep.subr.bf16.mxu0 0
    %2073 = vmatpush2.bf16.msra.mxu0 0
    %2074 = vmatprep.subr.bf16.mxu0 0
    %2075 = vmatpush2.bf16.msra.mxu0 0
    %2076 = vmatprep.subr.bf16.mxu0 0
    %2077 = vmatpush2.bf16.msra.mxu0 0
    %2078 = vmatprep.subr.bf16.mxu0 0
    %2079 = vmatpush2.bf16.msra.mxu0 0
    %2080 = vmatprep.subr.bf16.mxu0 0
    %2081 = vmatpush2.bf16.msra.mxu0 0
    %2082 = vmatprep.subr.bf16.mxu0 0
    %2083 = vmatpush2.bf16.msra.mxu0 0
    %2084 = vmatprep.mubr.bf16.mxu0 0
    %2085 = vmatmul.mubr.bf16.gmra.mxu0 %v1969
    %v2086 = vpop.f32.mrf.mxu0
    %v2087 = vadd.f32 0.0, %v2086
    %v2088 = vpop.f32.mrf.mxu0
    %v2089 = vpop.f32.mrf.mxu0
    %v2090 = vpop.f32.mrf.mxu0
    %2091 = vdwg.mxu0
    %v2108 = vunpack.c.l.b16 %v1971
    %v2109 = vunpack.c.l.b16 %v1972
    %v2110 = vunpack.c.l.b16 %v1973
    %v2111 = vunpack.c.l.b16 %v1974
    %v2112 = vunpack.c.l.b16 %v1975
    %v2113 = vunpack.c.l.b16 %v1976
    %v2114 = vunpack.c.l.b16 %v1977
    %v2115 = vunpack.c.l.b16 %v1978
    %v2116 = vunpack.c.l.b16 %v1979
    %v2117 = vunpack.c.l.b16 %v1980
    %v2118 = vunpack.c.l.b16 %v1981
    %v2119 = vunpack.c.l.b16 %v1982
    %v2120 = vunpack.c.l.b16 %v1983
    %v2121 = vunpack.c.l.b16 %v1984
    %v2122 = vunpack.c.l.b16 %v1985
    %v2123 = vunpack.c.l.b16 %v1986
    %v2124 = vpack.c.b16 %v2109, %v2108
    %v2125 = vpack.c.b16 %v2111, %v2110
    %v2126 = vpack.c.b16 %v2113, %v2112
    %v2127 = vpack.c.b16 %v2115, %v2114
    %v2128 = vpack.c.b16 %v2117, %v2116
    %v2129 = vpack.c.b16 %v2119, %v2118
    %v2130 = vpack.c.b16 %v2121, %v2120
    %v2131 = vpack.c.b16 %v2123, %v2122
    %2140 = vmatprep.subr.bf16.mxu0 0
    %2141 = vmatpush1.bf16.msra.mxu0 %v2131
    %2142 = vmatprep.subr.bf16.mxu0 0
    %2143 = vmatpush1.bf16.msra.mxu0 %v2130
    %2144 = vmatprep.subr.bf16.mxu0 0
    %2145 = vmatpush1.bf16.msra.mxu0 %v2129
    %2146 = vmatprep.subr.bf16.mxu0 0
    %2147 = vmatpush1.bf16.msra.mxu0 %v2128
    %2148 = vmatprep.subr.bf16.mxu0 0
    %2149 = vmatpush1.bf16.msra.mxu0 %v2127
    %2150 = vmatprep.subr.bf16.mxu0 0
    %2151 = vmatpush1.bf16.msra.mxu0 %v2126
    %2152 = vmatprep.subr.bf16.mxu0 0
    %2153 = vmatpush1.bf16.msra.mxu0 %v2125
    %2154 = vmatprep.subr.bf16.mxu0 0
    %2155 = vmatpush1.bf16.msra.mxu0 %v2124
    %2156 = vmatprep.subr.bf16.mxu0 0
    %2157 = vmatpush2.bf16.msra.mxu0 0
    %2158 = vmatprep.subr.bf16.mxu0 0
    %2159 = vmatpush2.bf16.msra.mxu0 0
    %2160 = vmatprep.subr.bf16.mxu0 0
    %2161 = vmatpush2.bf16.msra.mxu0 0
    %2162 = vmatprep.subr.bf16.mxu0 0
    %2163 = vmatpush2.bf16.msra.mxu0 0
    %2164 = vmatprep.subr.bf16.mxu0 0
    %2165 = vmatpush2.bf16.msra.mxu0 0
    %2166 = vmatprep.subr.bf16.mxu0 0
    %2167 = vmatpush2.bf16.msra.mxu0 0
    %2168 = vmatprep.subr.bf16.mxu0 0
    %2169 = vmatpush2.bf16.msra.mxu0 0
    %2170 = vmatprep.subr.bf16.mxu0 0
    %2171 = vmatpush2.bf16.msra.mxu0 0
    %2172 = vmatprep.mubr.bf16.mxu0 0
    %2173 = vmatmul.mubr.bf16.gmra.mxu0 %v56
    %v2174 = vpop.f32.mrf.mxu0
    %v2175 = vadd.f32 %v2087, %v2174
    %v2176 = vpop.f32.mrf.mxu0
    %v2177 = vpop.f32.mrf.mxu0
    %v2178 = vpop.f32.mrf.mxu0
    %2179 = vdwg.mxu0
    %v2180 = vlaneseq
    %v2181 = vshrl.u32 %v2180, 7
    %v2182 = vsub.s32 6, %v2181
    %v2183 = vrot.slane %v57, %v2182
    %v2184 = vadd.f32 %v2175, %v2183
    %v2185 = vmax.f32 %v2184, 0.0
    %v2186 = vpack.c.bf16 %v2185, %v2185
    %s2187 = scalar_lea.vmem [#allocation2], 896
    %v2188 = vld [vmem:[%s2187] sm:$0xf]
    %v2189 = vld [vmem:[%s2187 + $0x4] sm:$0xf]
    %v2190 = vld [vmem:[%s2187 + $0x8] sm:$0xf]
    %v2191 = vld [vmem:[%s2187 + $0xc] sm:$0xf]
    %v2192 = vld [vmem:[%s2187 + $0x10] sm:$0xf]
    %v2193 = vld [vmem:[%s2187 + $0x14] sm:$0xf]
    %v2194 = vld [vmem:[%s2187 + $0x18] sm:$0xf]
    %v2195 = vld [vmem:[%s2187 + $0x1c] sm:$0xf]
    %v2196 = vld [vmem:[%s2187 + $0x20] sm:$0xf]
    %v2197 = vld [vmem:[%s2187 + $0x24] sm:$0xf]
    %v2198 = vld [vmem:[%s2187 + $0x28] sm:$0xf]
    %v2199 = vld [vmem:[%s2187 + $0x2c] sm:$0xf]
    %v2200 = vld [vmem:[%s2187 + $0x30] sm:$0xf]
    %v2201 = vld [vmem:[%s2187 + $0x34] sm:$0xf]
    %v2202 = vld [vmem:[%s2187 + $0x38] sm:$0xf]
    %v2203 = vld [vmem:[%s2187 + $0x3c] sm:$0xf]
    %v2204 = vlaneseq
    %v2205 = vshrl.u32 %v2204, 7
    %v2206 = vsub.s32 7, %v2205
    %v2207 = vrot.slane %v57, %v2206
    %v2224 = vunpack.c.l.b16 %v2188
    %v2225 = vunpack.c.l.b16 %v2189
    %v2226 = vunpack.c.l.b16 %v2190
    %v2227 = vunpack.c.l.b16 %v2191
    %v2228 = vunpack.c.l.b16 %v2192
    %v2229 = vunpack.c.l.b16 %v2193
    %v2230 = vunpack.c.l.b16 %v2194
    %v2231 = vunpack.c.l.b16 %v2195
    %v2232 = vunpack.c.l.b16 %v2196
    %v2233 = vunpack.c.l.b16 %v2197
    %v2234 = vunpack.c.l.b16 %v2198
    %v2235 = vunpack.c.l.b16 %v2199
    %v2236 = vunpack.c.l.b16 %v2200
    %v2237 = vunpack.c.l.b16 %v2201
    %v2238 = vunpack.c.l.b16 %v2202
    %v2239 = vunpack.c.l.b16 %v2203
    %v2240 = vpack.c.b16 %v2225, %v2224
    %v2241 = vpack.c.b16 %v2227, %v2226
    %v2242 = vpack.c.b16 %v2229, %v2228
    %v2243 = vpack.c.b16 %v2231, %v2230
    %v2244 = vpack.c.b16 %v2233, %v2232
    %v2245 = vpack.c.b16 %v2235, %v2234
    %v2246 = vpack.c.b16 %v2237, %v2236
    %v2247 = vpack.c.b16 %v2239, %v2238
    %2256 = vmatprep.subr.bf16.mxu0 0
    %2257 = vmatpush1.bf16.msra.mxu0 %v2247
    %2258 = vmatprep.subr.bf16.mxu0 0
    %2259 = vmatpush1.bf16.msra.mxu0 %v2246
    %2260 = vmatprep.subr.bf16.mxu0 0
    %2261 = vmatpush1.bf16.msra.mxu0 %v2245
    %2262 = vmatprep.subr.bf16.mxu0 0
    %2263 = vmatpush1.bf16.msra.mxu0 %v2244
    %2264 = vmatprep.subr.bf16.mxu0 0
    %2265 = vmatpush1.bf16.msra.mxu0 %v2243
    %2266 = vmatprep.subr.bf16.mxu0 0
    %2267 = vmatpush1.bf16.msra.mxu0 %v2242
    %2268 = vmatprep.subr.bf16.mxu0 0
    %2269 = vmatpush1.bf16.msra.mxu0 %v2241
    %2270 = vmatprep.subr.bf16.mxu0 0
    %2271 = vmatpush1.bf16.msra.mxu0 %v2240
    %2272 = vmatprep.subr.bf16.mxu0 0
    %2273 = vmatpush2.bf16.msra.mxu0 0
    %2274 = vmatprep.subr.bf16.mxu0 0
    %2275 = vmatpush2.bf16.msra.mxu0 0
    %2276 = vmatprep.subr.bf16.mxu0 0
    %2277 = vmatpush2.bf16.msra.mxu0 0
    %2278 = vmatprep.subr.bf16.mxu0 0
    %2279 = vmatpush2.bf16.msra.mxu0 0
    %2280 = vmatprep.subr.bf16.mxu0 0
    %2281 = vmatpush2.bf16.msra.mxu0 0
    %2282 = vmatprep.subr.bf16.mxu0 0
    %2283 = vmatpush2.bf16.msra.mxu0 0
    %2284 = vmatprep.subr.bf16.mxu0 0
    %2285 = vmatpush2.bf16.msra.mxu0 0
    %2286 = vmatprep.subr.bf16.mxu0 0
    %2287 = vmatpush2.bf16.msra.mxu0 0
    %2288 = vmatprep.mubr.bf16.mxu0 0
    %2289 = vmatmul.mubr.bf16.gmra.mxu0 %v2186
    %v2290 = vpop.f32.mrf.mxu0
    %v2291 = vadd.f32 %v2207, %v2290
    %v2292 = vpop.f32.mrf.mxu0
    %v2293 = vpop.f32.mrf.mxu0
    %v2294 = vpop.f32.mrf.mxu0
    %2295 = vdwg.mxu0
    %2296 = vst [vmem:[#allocation5] sm:$0x3] %v2291
    // Predicated region
    $region30: #{meta_layer_forward.1} parent=1 // pred_check
      _
    $region31: #{meta_layer_forward.1} parent=1 // pred_check_branch
      %2298 = sbr.rel (0) target = $region33
    $region32: #{meta_layer_forward.1} parent=1 // pred_region
      _
    $region33: #{meta_layer_forward.1} parent=1 // pred_fallthru
      _
    // Predicated region
    $region34: #{meta_layer_forward.1} parent=1 // pred_check
      _
    $region35: #{meta_layer_forward.1} parent=1 // pred_check_branch
      %2300 = sbr.rel (0) target = $region37
    $region36: #{meta_layer_forward.1} parent=1 // pred_region
      _
    $region37: #{meta_layer_forward.1} parent=1 // pred_fallthru
      _
    // Predicated region
    $region38: #{meta_layer_forward.1} parent=1 // pred_check
      _
    $region39: #{meta_layer_forward.1} parent=1 // pred_check_branch
      %2302 = sbr.rel (0) target = $region41
    $region40: #{meta_layer_forward.1} parent=1 // pred_region
      %s2304 = ssub.s32 32, 32
      %2305 = vsyncadd [#allocation4], %s2304
      %s2307 = sshll.u32 [#allocation5], 4
      %s2308 = int_to_ptr.vmem [resolvable:$true] %s2307
      %2310 = dma.vmem_to_hbm [thread:$0]  %s2308, 32, %s8, [#allocation4]
    $region41: #{meta_layer_forward.1} parent=1 // pred_fallthru
      _
    // Predicated region
    $region42: #{meta_layer_forward.1} parent=1 // pred_check
      _
    $region43: #{meta_layer_forward.1} parent=1 // pred_check_branch
      %2312 = sbr.rel (0) target = $region45
    $region44: #{meta_layer_forward.1} parent=1 // pred_region
      _
    $region45: #{meta_layer_forward.1} parent=1 // pred_fallthru
      _
    // Predicated region
    $region46: #{meta_layer_forward.1} parent=1 // pred_check
      _
    $region47: #{meta_layer_forward.1} parent=1 // pred_check_branch
      %2314 = sbr.rel (0) target = $region49
    $region48: #{meta_layer_forward.1} parent=1 // pred_region
      _
    $region49: #{meta_layer_forward.1} parent=1 // pred_fallthru
      _
    // Predicated region
    $region50: #{meta_layer_forward.1} parent=1 // pred_check
      _
    $region51: #{meta_layer_forward.1} parent=1 // pred_check_branch
      %2316 = sbr.rel (0) target = $region53
    $region52: #{meta_layer_forward.1} parent=1 // pred_region
      %2317 = dma.done [#allocation4], 32
    $region53: #{meta_layer_forward.1} parent=1 // pred_fallthru
      _
    %2318 = vsyncpa [#allocation3], 1
    %2319 = vsyncpa [#allocation4], 1

</llo_original>
